<compile_context>
chip_gen: v6e
topology: v6e:2x2x1
jax: 0.10.0
libtpu: 0.0.40
codegen_flags: <defaults>
</compile_context>

<pallas_src>
import jax
import jax.numpy as jnp
from jax.experimental import pallas as pl
from jax.experimental.pallas import tpu as pltpu


# ----------------------------------------------------------------------------
# Fused kernel: conv chain + pooling + heads for one batch tile.
# ----------------------------------------------------------------------------
def _fused_lightmbn_kernel(x_ref, wb_ref, wbr_ref, wbt_ref,
                           wred_ref, wsh_ref, bng_ref, bnb_ref, out_ref):
    bt, H, W, Cin = x_ref.shape
    Cb = wb_ref.shape[1]
    half = Cb // 2
    half_rows = (H // 2) * W
    rows = bt * H * W
    inv_full = 1.0 / float(H * W)
    inv_half = 1.0 / float(half_rows)

    # ---- fused 1x1-conv chain (backbone -> shared branch -> bottleneck) ----
    # Layout-preserving reshape: channels stay on lanes, (b,h,w) collapse onto
    # the sublane axis, so no relayout copy is introduced.
    x = x_ref[...].reshape(rows, Cin)
    feat = jnp.maximum(
        jnp.dot(x, wb_ref[...], preferred_element_type=jnp.float32), 0.0)
    branch = jnp.maximum(
        jnp.dot(feat, wbr_ref[...], preferred_element_type=jnp.float32), 0.0)
    glo = jnp.maximum(
        jnp.dot(branch, wbt_ref[...], preferred_element_type=jnp.float32), 0.0)

    # ---- pooling: everything stays in VMEM, only pooled vectors survive ----
    br3 = branch.reshape(bt, H * W, Cb)
    top_sum = jnp.sum(br3[:, :half_rows, :], axis=1)      # (bt, Cb)
    bot_sum = jnp.sum(br3[:, half_rows:, :], axis=1)      # (bt, Cb)
    par_top = top_sum * inv_half                           # AdaptiveAvgPool2d((2,1)) row 0
    par_bot = bot_sum * inv_half                           # AdaptiveAvgPool2d((2,1)) row 1
    br_pool = (top_sum + bot_sum) * inv_full               # (1,1) pool of branch (cha & par_max)
    glo_pool = jnp.sum(glo.reshape(bt, H * W, Cb), axis=1) * inv_full

    # ---- heads: two batched MXU calls instead of seven M=1 dots -------------
    gamma = bng_ref[...]                                    # (1, F), shared across heads
    beta = bnb_ref[...]

    red_in = jnp.concatenate([glo_pool, par_top, par_bot, br_pool], axis=0)  # (4*bt, Cb)
    red = jnp.dot(red_in, wred_ref[...], preferred_element_type=jnp.float32)
    red = red * gamma + beta                                # BN-neck (identity-init)
    f_glo = red[0:bt]            # also f_glo_drop (drop path is a no-op in eval)
    f_p1 = red[bt:2 * bt]
    f_p2 = red[2 * bt:3 * bt]
    f_pg = red[3 * bt:4 * bt]

    cha_in = jnp.concatenate([br_pool[:, :half], br_pool[:, half:]], axis=0)  # (2*bt, Cb/2)
    cha = jnp.maximum(
        jnp.dot(cha_in, wsh_ref[...], preferred_element_type=jnp.float32), 0.0)
    cha = cha * gamma + beta
    f_c1 = cha[0:bt]
    f_c2 = cha[bt:2 * bt]

    # torch.cat((f_glo_drop, f_glo, f_c1, f_c2, f_p1, f_p2, f_pg), dim=1),
    # emitted lane-dense as one unmasked store of (bt, 7*F).
    out_ref[...] = jnp.concatenate(
        [f_glo, f_glo, f_c1, f_c2, f_p1, f_p2, f_pg], axis=1).astype(out_ref.dtype)


def _pick_batch_tile(B, H, W, Cb):
    """Largest batch tile whose fp32 working set (feat/branch/glo) fits VMEM."""
    per_sample = 3 * H * W * Cb * 4
    budget = 8 << 20                    # stay well under the scoped VMEM limit
    if B * per_sample <= budget:
        return B
    # If splitting, keep the tile a multiple of 8 (output sublane rule) that divides B.
    bt = max(8, (min(B, budget // per_sample) // 8) * 8)
    while bt > 8 and B % bt:
        bt -= 8
    return bt if B % bt == 0 else B


# ----------------------------------------------------------------------------
# Full forward (inference path: targets is None)
# ----------------------------------------------------------------------------
def lightmbn_forward(x, params):
    B, H, W, Cin = x.shape
    assert H % 2 == 0  # TODO(synk): odd H needs AdaptiveAvgPool2d ceil/floor windows
    Cb = params["w_backbone"].shape[1]
    F = params["w_reduction"].shape[1]
    bt = _pick_batch_tile(B, H, W, Cb)
    assert B % bt == 0

    w_spec = lambda a: pl.BlockSpec(a.shape, lambda i: (0, 0))  # weights: constant index,
    # small enough that default double-buffering is irrelevant at grid length B//bt.

    return pl.pallas_call(
        _fused_lightmbn_kernel,
        out_shape=jax.ShapeDtypeStruct((B, 7 * F), jnp.float32),
        grid=(B // bt,),
        in_specs=[
            pl.BlockSpec((bt, H, W, Cin), lambda i: (i, 0, 0, 0)),
            w_spec(params["w_backbone"]),
            w_spec(params["w_branch"]),
            w_spec(params["w_bottleneck"]),
            w_spec(params["w_reduction"]),
            w_spec(params["w_shared"]),
            w_spec(params["bn_gamma"]),
            w_spec(params["bn_beta"]),
        ],
        out_specs=pl.BlockSpec((bt, 7 * F), lambda i: (i, 0)),
        compiler_params=pltpu.CompilerParams(dimension_semantics=("parallel",)),
    )(x, params["w_backbone"], params["w_branch"], params["w_bottleneck"],
      params["w_reduction"], params["w_shared"],
      params["bn_gamma"], params["bn_beta"])


# ----------------------------------------------------------------------------
# Parameters (stand-ins for the external backbone / branch / head modules)
# ----------------------------------------------------------------------------
def init_params(key, c_in, backbone_dim, feature_dim):
    ks = jax.random.split(key, 5)

    def kaiming(k, shape, fan):
        return jax.random.normal(k, shape, jnp.float32) * jnp.sqrt(2.0 / fan)

    return {
        "w_backbone":   kaiming(ks[0], (c_in, backbone_dim), c_in),
        "w_branch":     kaiming(ks[1], (backbone_dim, backbone_dim), backbone_dim),
        "w_bottleneck": kaiming(ks[2], (backbone_dim, backbone_dim), backbone_dim),
        # one reduction weight, deepcopied 5x in the reference
        "w_reduction":  kaiming(ks[3], (backbone_dim, feature_dim), backbone_dim),
        # shared_channel_conv: kaiming fan_in, no bias
        "w_shared":     kaiming(ks[4], (backbone_dim // 2, feature_dim),
                                backbone_dim // 2),
        # BN-neck head params (identity init, shared across deepcopied heads)
        "bn_gamma": jnp.ones((1, feature_dim), jnp.float32),
        "bn_beta":  jnp.zeros((1, feature_dim), jnp.float32),
    }


# ----------------------------------------------------------------------------
# Pure-JAX reference (for correctness checking of the fused kernel)
# ----------------------------------------------------------------------------
def lightmbn_reference(x, params):
    hi = jax.lax.Precision.HIGHEST
    conv = lambda a, w: jnp.maximum(
        jnp.einsum("bhwc,cd->bhwd", a, w, precision=hi), 0.0)
    mm = lambda a, w: jnp.dot(a, w, precision=hi)

    B, H, W, _ = x.shape
    feat = conv(x, params["w_backbone"])
    branch = conv(feat, params["w_branch"])
    glo = conv(branch, params["w_bottleneck"])

    glo_pool = jnp.mean(glo, axis=(1, 2))
    br_pool = jnp.mean(branch, axis=(1, 2))
    par_top = jnp.mean(branch[:, :H // 2], axis=(1, 2))
    par_bot = jnp.mean(branch[:, H // 2:], axis=(1, 2))

    wr, ws = params["w_reduction"], params["w_shared"]
    g, b = params["bn_gamma"], params["bn_beta"]
    half = branch.shape[-1] // 2
    bn = lambda v: v * g + b

    f_glo = bn(mm(glo_pool, wr))
    f_p1 = bn(mm(par_top, wr))
    f_p2 = bn(mm(par_bot, wr))
    f_pg = bn(mm(br_pool, wr))
    f_c1 = bn(jnp.maximum(mm(br_pool[:, :half], ws), 0.0))
    f_c2 = bn(jnp.maximum(mm(br_pool[:, half:], ws), 0.0))
    return jnp.concatenate([f_glo, f_glo, f_c1, f_c2, f_p1, f_p2, f_pg], axis=1)


if __name__ == "__main__":
    B, C_IN, H, W = 2, 4, 16, 16
    BACKBONE_DIM, FEATURE_DIM = 32, 32

    key = jax.random.PRNGKey(0)
    kx, kp = jax.random.split(key)
    # layout: NHWC (PyTorch-equivalent NCHW shape would be (B, C_IN, H, W))
    x = jax.random.normal(kx, (B, H, W, C_IN), jnp.float32)
    params = init_params(kp, C_IN, BACKBONE_DIM, FEATURE_DIM)

    out = jax.block_until_ready(lightmbn_forward(x, params))
    assert out.shape == (B, 7 * FEATURE_DIM), out.shape
    assert bool(jnp.all(jnp.isfinite(out)))

    ref = jax.block_until_ready(lightmbn_reference(x, params))
    assert float(jnp.max(jnp.abs(out - ref))) < 5e-2, "kernel/reference mismatch"

    print("KERNEL_OK")
</pallas_src>

<mosaic_0001>
module attributes {stable_mosaic.version = 11 : i64} {
  func.func @_fused_lightmbn_kernel(%arg0: i32, %arg1: memref<2x16x16x4xf32, #tpu.memory_space<vmem>>, %arg2: memref<4x32xf32, #tpu.memory_space<vmem>>, %arg3: memref<32x32xf32, #tpu.memory_space<vmem>>, %arg4: memref<32x32xf32, #tpu.memory_space<vmem>>, %arg5: memref<32x32xf32, #tpu.memory_space<vmem>>, %arg6: memref<16x32xf32, #tpu.memory_space<vmem>>, %arg7: memref<1x32xf32, #tpu.memory_space<vmem>>, %arg8: memref<1x32xf32, #tpu.memory_space<vmem>>, %arg9: memref<2x224xf32, #tpu.memory_space<vmem>>) attributes {dimension_semantics = [#tpu.dimension_semantics<parallel>], iteration_bounds = array<i64: 1>, scalar_prefetch = 0 : i64, scratch_operands = 0 : i64, tpu.core_type = #tpu.core_type<tc>, window_params = [{transform_indices = @transform_0, window_bounds = array<i64: 2, 16, 16, 4>}, {pipeline_mode = #tpu.pipeline_mode<synchronous>, transform_indices = @transform_1, window_bounds = array<i64: 4, 32>}, {pipeline_mode = #tpu.pipeline_mode<synchronous>, transform_indices = @transform_2, window_bounds = array<i64: 32, 32>}, {pipeline_mode = #tpu.pipeline_mode<synchronous>, transform_indices = @transform_3, window_bounds = array<i64: 32, 32>}, {pipeline_mode = #tpu.pipeline_mode<synchronous>, transform_indices = @transform_4, window_bounds = array<i64: 32, 32>}, {pipeline_mode = #tpu.pipeline_mode<synchronous>, transform_indices = @transform_5, window_bounds = array<i64: 16, 32>}, {pipeline_mode = #tpu.pipeline_mode<synchronous>, transform_indices = @transform_6, window_bounds = array<i64: 1, 32>}, {pipeline_mode = #tpu.pipeline_mode<synchronous>, transform_indices = @transform_7, window_bounds = array<i64: 1, 32>}, {transform_indices = @transform_8, window_bounds = array<i64: 2, 224>}]} {
    %c0 = arith.constant 0 : index
    %c0_0 = arith.constant 0 : index
    %c0_1 = arith.constant 0 : index
    %c0_2 = arith.constant 0 : index
    %0 = vector.load %arg1[%c0, %c0_0, %c0_1, %c0_2] : memref<2x16x16x4xf32, #tpu.memory_space<vmem>>, vector<2x16x16x4xf32>
    %1 = vector.shape_cast %0 : vector<2x16x16x4xf32> to vector<512x4xf32>
    %c0_3 = arith.constant 0 : index
    %c0_4 = arith.constant 0 : index
    %2 = vector.load %arg2[%c0_3, %c0_4] : memref<4x32xf32, #tpu.memory_space<vmem>>, vector<4x32xf32>
    %cst = arith.constant dense<0.000000e+00> : vector<512x32xf32>
    %3 = tpu.matmul %1, %2, %cst {dimension_numbers = #tpu.dot_dimension_numbers<[1], [0], [0], [1], [0, 0, 1, 1], [], []>} : vector<512x4xf32>, vector<4x32xf32>, vector<512x32xf32> -> vector<512x32xf32>
    %cst_5 = arith.constant 0.000000e+00 : f32
    %4 = vector.broadcast %cst_5 : f32 to vector<512x32xf32>
    %5 = arith.maximumf %3, %4 : vector<512x32xf32>
    %c0_6 = arith.constant 0 : index
    %c0_7 = arith.constant 0 : index
    %6 = vector.load %arg3[%c0_6, %c0_7] : memref<32x32xf32, #tpu.memory_space<vmem>>, vector<32x32xf32>
    %cst_8 = arith.constant dense<0.000000e+00> : vector<512x32xf32>
    %7 = tpu.matmul %5, %6, %cst_8 {dimension_numbers = #tpu.dot_dimension_numbers<[1], [0], [0], [1], [0, 0, 1, 1], [], []>} : vector<512x32xf32>, vector<32x32xf32>, vector<512x32xf32> -> vector<512x32xf32>
    %cst_9 = arith.constant 0.000000e+00 : f32
    %8 = vector.broadcast %cst_9 : f32 to vector<512x32xf32>
    %9 = arith.maximumf %7, %8 : vector<512x32xf32>
    %c0_10 = arith.constant 0 : index
    %c0_11 = arith.constant 0 : index
    %10 = vector.load %arg4[%c0_10, %c0_11] : memref<32x32xf32, #tpu.memory_space<vmem>>, vector<32x32xf32>
    %cst_12 = arith.constant dense<0.000000e+00> : vector<512x32xf32>
    %11 = tpu.matmul %9, %10, %cst_12 {dimension_numbers = #tpu.dot_dimension_numbers<[1], [0], [0], [1], [0, 0, 1, 1], [], []>} : vector<512x32xf32>, vector<32x32xf32>, vector<512x32xf32> -> vector<512x32xf32>
    %cst_13 = arith.constant 0.000000e+00 : f32
    %12 = vector.broadcast %cst_13 : f32 to vector<512x32xf32>
    %13 = arith.maximumf %11, %12 : vector<512x32xf32>
    %14 = vector.shape_cast %9 : vector<512x32xf32> to vector<2x256x32xf32>
    %15 = vector.extract_strided_slice %14 {offsets = [0, 0, 0], sizes = [2, 128, 32], strides = [1, 1, 1]} : vector<2x256x32xf32> to vector<2x128x32xf32>
    %cst_14 = arith.constant dense<0.000000e+00> : vector<2x32xf32>
    %16 = vector.multi_reduction <add>, %15, %cst_14 [1] : vector<2x128x32xf32> to vector<2x32xf32>
    %17 = vector.extract_strided_slice %14 {offsets = [0, 128, 0], sizes = [2, 128, 32], strides = [1, 1, 1]} : vector<2x256x32xf32> to vector<2x128x32xf32>
    %cst_15 = arith.constant dense<0.000000e+00> : vector<2x32xf32>
    %18 = vector.multi_reduction <add>, %17, %cst_15 [1] : vector<2x128x32xf32> to vector<2x32xf32>
    %cst_16 = arith.constant 7.812500e-03 : f32
    %19 = vector.broadcast %cst_16 : f32 to vector<2x32xf32>
    %20 = arith.mulf %16, %19 : vector<2x32xf32>
    %cst_17 = arith.constant 7.812500e-03 : f32
    %21 = vector.broadcast %cst_17 : f32 to vector<2x32xf32>
    %22 = arith.mulf %18, %21 : vector<2x32xf32>
    %23 = arith.addf %16, %18 : vector<2x32xf32>
    %cst_18 = arith.constant 3.906250e-03 : f32
    %24 = vector.broadcast %cst_18 : f32 to vector<2x32xf32>
    %25 = arith.mulf %23, %24 : vector<2x32xf32>
    %26 = vector.shape_cast %13 : vector<512x32xf32> to vector<2x256x32xf32>
    %cst_19 = arith.constant dense<0.000000e+00> : vector<2x32xf32>
    %27 = vector.multi_reduction <add>, %26, %cst_19 [1] : vector<2x256x32xf32> to vector<2x32xf32>
    %cst_20 = arith.constant 3.906250e-03 : f32
    %28 = vector.broadcast %cst_20 : f32 to vector<2x32xf32>
    %29 = arith.mulf %27, %28 : vector<2x32xf32>
    %c0_21 = arith.constant 0 : index
    %c0_22 = arith.constant 0 : index
    %30 = vector.load %arg7[%c0_21, %c0_22] : memref<1x32xf32, #tpu.memory_space<vmem>>, vector<1x32xf32>
    %c0_23 = arith.constant 0 : index
    %c0_24 = arith.constant 0 : index
    %31 = vector.load %arg8[%c0_23, %c0_24] : memref<1x32xf32, #tpu.memory_space<vmem>>, vector<1x32xf32>
    %32 = tpu.concatenate %29, %20, %22, %25 in 0 : vector<2x32xf32>, vector<2x32xf32>, vector<2x32xf32>, vector<2x32xf32> -> vector<8x32xf32>
    %c0_25 = arith.constant 0 : index
    %c0_26 = arith.constant 0 : index
    %33 = vector.load %arg5[%c0_25, %c0_26] : memref<32x32xf32, #tpu.memory_space<vmem>>, vector<32x32xf32>
    %cst_27 = arith.constant dense<0.000000e+00> : vector<8x32xf32>
    %34 = tpu.matmul %32, %33, %cst_27 {dimension_numbers = #tpu.dot_dimension_numbers<[1], [0], [0], [1], [0, 0, 1, 1], [], []>} : vector<8x32xf32>, vector<32x32xf32>, vector<8x32xf32> -> vector<8x32xf32>
    %35 = vector.broadcast %30 : vector<1x32xf32> to vector<8x32xf32>
    %36 = arith.mulf %34, %35 : vector<8x32xf32>
    %37 = vector.broadcast %31 : vector<1x32xf32> to vector<8x32xf32>
    %38 = arith.addf %36, %37 : vector<8x32xf32>
    %39 = vector.extract_strided_slice %38 {offsets = [0, 0], sizes = [2, 32], strides = [1, 1]} : vector<8x32xf32> to vector<2x32xf32>
    %40 = vector.extract_strided_slice %38 {offsets = [2, 0], sizes = [2, 32], strides = [1, 1]} : vector<8x32xf32> to vector<2x32xf32>
    %41 = vector.extract_strided_slice %38 {offsets = [4, 0], sizes = [2, 32], strides = [1, 1]} : vector<8x32xf32> to vector<2x32xf32>
    %42 = vector.extract_strided_slice %38 {offsets = [6, 0], sizes = [2, 32], strides = [1, 1]} : vector<8x32xf32> to vector<2x32xf32>
    %43 = vector.extract_strided_slice %25 {offsets = [0, 0], sizes = [2, 16], strides = [1, 1]} : vector<2x32xf32> to vector<2x16xf32>
    %44 = vector.extract_strided_slice %25 {offsets = [0, 16], sizes = [2, 16], strides = [1, 1]} : vector<2x32xf32> to vector<2x16xf32>
    %45 = tpu.concatenate %43, %44 in 0 : vector<2x16xf32>, vector<2x16xf32> -> vector<4x16xf32>
    %c0_28 = arith.constant 0 : index
    %c0_29 = arith.constant 0 : index
    %46 = vector.load %arg6[%c0_28, %c0_29] : memref<16x32xf32, #tpu.memory_space<vmem>>, vector<16x32xf32>
    %cst_30 = arith.constant dense<0.000000e+00> : vector<4x32xf32>
    %47 = tpu.matmul %45, %46, %cst_30 {dimension_numbers = #tpu.dot_dimension_numbers<[1], [0], [0], [1], [0, 0, 1, 1], [], []>} : vector<4x16xf32>, vector<16x32xf32>, vector<4x32xf32> -> vector<4x32xf32>
    %cst_31 = arith.constant 0.000000e+00 : f32
    %48 = vector.broadcast %cst_31 : f32 to vector<4x32xf32>
    %49 = arith.maximumf %47, %48 : vector<4x32xf32>
    %50 = vector.broadcast %30 : vector<1x32xf32> to vector<4x32xf32>
    %51 = arith.mulf %49, %50 : vector<4x32xf32>
    %52 = vector.broadcast %31 : vector<1x32xf32> to vector<4x32xf32>
    %53 = arith.addf %51, %52 : vector<4x32xf32>
    %54 = vector.extract_strided_slice %53 {offsets = [0, 0], sizes = [2, 32], strides = [1, 1]} : vector<4x32xf32> to vector<2x32xf32>
    %55 = vector.extract_strided_slice %53 {offsets = [2, 0], sizes = [2, 32], strides = [1, 1]} : vector<4x32xf32> to vector<2x32xf32>
    %56 = tpu.concatenate %39, %39, %54, %55, %40, %41, %42 in 1 : vector<2x32xf32>, vector<2x32xf32>, vector<2x32xf32>, vector<2x32xf32>, vector<2x32xf32>, vector<2x32xf32>, vector<2x32xf32> -> vector<2x224xf32>
    %c0_32 = arith.constant 0 : index
    %c0_33 = arith.constant 0 : index
    %57 = vector.load %arg9[%c0_32, %c0_33] : memref<2x224xf32, #tpu.memory_space<vmem>>, vector<2x224xf32>
    tpu.vector_store %arg9[%c0_32, %c0_33], %56 {strides = array<i32>} : memref<2x224xf32, #tpu.memory_space<vmem>>, vector<2x224xf32>,
    return
  }
  func.func @transform_0(%arg0: i32) -> (i32, i32, i32, i32) {
    %c0_i32 = arith.constant 0 : i32
    %c0_i32_0 = arith.constant 0 : i32
    %c0_i32_1 = arith.constant 0 : i32
    %c0_i32_2 = arith.constant 0 : i32
    return %arg0, %c0_i32, %c0_i32_0, %c0_i32_1 : i32, i32, i32, i32
  }
  func.func @transform_1(%arg0: i32) -> (i32, i32) {
    %c0_i32 = arith.constant 0 : i32
    %c0_i32_0 = arith.constant 0 : i32
    %c0_i32_1 = arith.constant 0 : i32
    return %c0_i32, %c0_i32_0 : i32, i32
  }
  func.func @transform_2(%arg0: i32) -> (i32, i32) {
    %c0_i32 = arith.constant 0 : i32
    %c0_i32_0 = arith.constant 0 : i32
    %c0_i32_1 = arith.constant 0 : i32
    return %c0_i32, %c0_i32_0 : i32, i32
  }
  func.func @transform_3(%arg0: i32) -> (i32, i32) {
    %c0_i32 = arith.constant 0 : i32
    %c0_i32_0 = arith.constant 0 : i32
    %c0_i32_1 = arith.constant 0 : i32
    return %c0_i32, %c0_i32_0 : i32, i32
  }
  func.func @transform_4(%arg0: i32) -> (i32, i32) {
    %c0_i32 = arith.constant 0 : i32
    %c0_i32_0 = arith.constant 0 : i32
    %c0_i32_1 = arith.constant 0 : i32
    return %c0_i32, %c0_i32_0 : i32, i32
  }
  func.func @transform_5(%arg0: i32) -> (i32, i32) {
    %c0_i32 = arith.constant 0 : i32
    %c0_i32_0 = arith.constant 0 : i32
    %c0_i32_1 = arith.constant 0 : i32
    return %c0_i32, %c0_i32_0 : i32, i32
  }
  func.func @transform_6(%arg0: i32) -> (i32, i32) {
    %c0_i32 = arith.constant 0 : i32
    %c0_i32_0 = arith.constant 0 : i32
    %c0_i32_1 = arith.constant 0 : i32
    return %c0_i32, %c0_i32_0 : i32, i32
  }
  func.func @transform_7(%arg0: i32) -> (i32, i32) {
    %c0_i32 = arith.constant 0 : i32
    %c0_i32_0 = arith.constant 0 : i32
    %c0_i32_1 = arith.constant 0 : i32
    return %c0_i32, %c0_i32_0 : i32, i32
  }
  func.func @transform_8(%arg0: i32) -> (i32, i32) {
    %c0_i32 = arith.constant 0 : i32
    %c0_i32_0 = arith.constant 0 : i32
    return %arg0, %c0_i32 : i32, i32
  }
}

</mosaic_0001>

<llo_original>
// kernel: tpu_custom_call.1
$region0: #{tpu_custom_call.1}
  #allocation0 [shape = 'u32[]', space=smem, size = 0x4, offset = 0x4, fixed_abs, tag = 'smem constant byte address 0x4 - core index']
  #allocation1 [shape = 'u32[144,128]{1,0:T(1,128)}', space=vmem, size = 0x12000, scoped, tag = 'internal scratch']
  %s0 = inlined_call_operand.vmem [shape: f32[2,16,16,4], index: 0, kind: input, shape index: {}]
  %s1 = inlined_call_operand.vmem [shape: f32[4,32], index: 1, kind: input, shape index: {}]
  %s2 = inlined_call_operand.vmem [shape: f32[32,32], index: 2, kind: input, shape index: {}]
  %s3 = inlined_call_operand.vmem [shape: f32[32,32], index: 3, kind: input, shape index: {}]
  %s4 = inlined_call_operand.vmem [shape: f32[32,32], index: 4, kind: input, shape index: {}]
  %s5 = inlined_call_operand.vmem [shape: f32[16,32], index: 5, kind: input, shape index: {}]
  %s6 = inlined_call_operand.vmem [shape: f32[1,32], index: 6, kind: input, shape index: {}]
  %s7 = inlined_call_operand.vmem [shape: f32[1,32], index: 7, kind: input, shape index: {}]
  %s8 = inlined_call_operand.hbm [shape: f32[2,224], index: 8, kind: output, shape index: {}]
  %s9 = sld [smem:[#allocation0]]
  $region42: #{tpu_custom_call.1} parent=0
    _
  %s11 = ssub.s32 1, %s9
  %s12 = scalar_select 0, %s11, %s9
  $region1: #{tpu_custom_call.1} parent=0
    #allocation2 [shape = 'u8[2048]{0}', space=vmem, size = 0x800, scoped, tag = 'output window, operand 0, single buffered']
    #allocation3 [shape = 's32[1]{0}', space=sflag, size = 0x4, scoped, tag = 'scoped memory for tpu_custom_call.1']
    %13 = vsyncpa [#allocation3], 0
    // Predicated region
    $region2: #{tpu_custom_call.1} parent=1 // pred_check
      _
    $region3: #{tpu_custom_call.1} parent=1 // pred_check_branch
      %15 = sbr.rel (0) target = $region5
    $region4: #{tpu_custom_call.1} parent=1 // pred_region
      _
    $region5: #{tpu_custom_call.1} parent=1 // pred_fallthru
      _
    // Predicated region
    $region6: #{tpu_custom_call.1} parent=1 // pred_check
      _
    $region7: #{tpu_custom_call.1} parent=1 // pred_check_branch
      %17 = sbr.rel (0) target = $region9
    $region8: #{tpu_custom_call.1} parent=1 // pred_region
      _
    $region9: #{tpu_custom_call.1} parent=1 // pred_fallthru
      _
    // Predicated region
    $region10: #{tpu_custom_call.1} parent=1 // pred_check
      _
    $region11: #{tpu_custom_call.1} parent=1 // pred_check_branch
      %19 = sbr.rel (0) target = $region13
    $region12: #{tpu_custom_call.1} parent=1 // pred_region
      _
    $region13: #{tpu_custom_call.1} parent=1 // pred_fallthru
      _
    // Predicated region
    $region14: #{tpu_custom_call.1} parent=1 // pred_check
      _
    $region15: #{tpu_custom_call.1} parent=1 // pred_check_branch
      %21 = sbr.rel (0) target = $region17
    $region16: #{tpu_custom_call.1} parent=1 // pred_region
      _
    $region17: #{tpu_custom_call.1} parent=1 // pred_fallthru
      _
    // Predicated region
    $region18: #{tpu_custom_call.1} parent=1 // pred_check
      _
    $region19: #{tpu_custom_call.1} parent=1 // pred_check_branch
      %23 = sbr.rel (0) target = $region21
    $region20: #{tpu_custom_call.1} parent=1 // pred_region
      _
    $region21: #{tpu_custom_call.1} parent=1 // pred_fallthru
      _
    // Predicated region
    $region22: #{tpu_custom_call.1} parent=1 // pred_check
      _
    $region23: #{tpu_custom_call.1} parent=1 // pred_check_branch
      %25 = sbr.rel (0) target = $region25
    $region24: #{tpu_custom_call.1} parent=1 // pred_region
      _
    $region25: #{tpu_custom_call.1} parent=1 // pred_fallthru
      _
    // Predicated region
    $region26: #{tpu_custom_call.1} parent=1 // pred_check
      _
    $region27: #{tpu_custom_call.1} parent=1 // pred_check_branch
      %27 = sbr.rel (0) target = $region29
    $region28: #{tpu_custom_call.1} parent=1 // pred_region
      _
    $region29: #{tpu_custom_call.1} parent=1 // pred_fallthru
      _
    // Predicated region
    $region30: #{tpu_custom_call.1} parent=1 // pred_check
      _
    $region31: #{tpu_custom_call.1} parent=1 // pred_check_branch
      %29 = sbr.rel (0) target = $region33
    $region32: #{tpu_custom_call.1} parent=1 // pred_region
      _
    $region33: #{tpu_custom_call.1} parent=1 // pred_fallthru
      _
    %v30 = vld [vmem:[%s0] sm:$0xff]
    %v31 = vld [vmem:[%s0 + $0x8] sm:$0xff]
    %v32 = vld [vmem:[%s0 + $0x10] sm:$0xff]
    %v33 = vld [vmem:[%s0 + $0x18] sm:$0xff]
    %v34 = vld [vmem:[%s0 + $0x20] sm:$0xff]
    %v35 = vld [vmem:[%s0 + $0x28] sm:$0xff]
    %v36 = vld [vmem:[%s0 + $0x30] sm:$0xff]
    %v37 = vld [vmem:[%s0 + $0x38] sm:$0xff]
    %v38 = vld [vmem:[%s0 + $0x40] sm:$0xff]
    %v39 = vld [vmem:[%s0 + $0x48] sm:$0xff]
    %v40 = vld [vmem:[%s0 + $0x50] sm:$0xff]
    %v41 = vld [vmem:[%s0 + $0x58] sm:$0xff]
    %v42 = vld [vmem:[%s0 + $0x60] sm:$0xff]
    %v43 = vld [vmem:[%s0 + $0x68] sm:$0xff]
    %v44 = vld [vmem:[%s0 + $0x70] sm:$0xff]
    %v45 = vld [vmem:[%s0 + $0x78] sm:$0xff]
    %v46 = vld [vmem:[%s0 + $0x80] sm:$0xff]
    %v47 = vld [vmem:[%s0 + $0x88] sm:$0xff]
    %v48 = vld [vmem:[%s0 + $0x90] sm:$0xff]
    %v49 = vld [vmem:[%s0 + $0x98] sm:$0xff]
    %v50 = vld [vmem:[%s0 + $0xa0] sm:$0xff]
    %v51 = vld [vmem:[%s0 + $0xa8] sm:$0xff]
    %v52 = vld [vmem:[%s0 + $0xb0] sm:$0xff]
    %v53 = vld [vmem:[%s0 + $0xb8] sm:$0xff]
    %v54 = vld [vmem:[%s0 + $0xc0] sm:$0xff]
    %v55 = vld [vmem:[%s0 + $0xc8] sm:$0xff]
    %v56 = vld [vmem:[%s0 + $0xd0] sm:$0xff]
    %v57 = vld [vmem:[%s0 + $0xd8] sm:$0xff]
    %v58 = vld [vmem:[%s0 + $0xe0] sm:$0xff]
    %v59 = vld [vmem:[%s0 + $0xe8] sm:$0xff]
    %v60 = vld [vmem:[%s0 + $0xf0] sm:$0xff]
    %v61 = vld [vmem:[%s0 + $0xf8] sm:$0xff]
    %v62 = vld [vmem:[%s0 + $0x100] sm:$0xff]
    %v63 = vld [vmem:[%s0 + $0x108] sm:$0xff]
    %v64 = vld [vmem:[%s0 + $0x110] sm:$0xff]
    %v65 = vld [vmem:[%s0 + $0x118] sm:$0xff]
    %v66 = vld [vmem:[%s0 + $0x120] sm:$0xff]
    %v67 = vld [vmem:[%s0 + $0x128] sm:$0xff]
    %v68 = vld [vmem:[%s0 + $0x130] sm:$0xff]
    %v69 = vld [vmem:[%s0 + $0x138] sm:$0xff]
    %v70 = vld [vmem:[%s0 + $0x140] sm:$0xff]
    %v71 = vld [vmem:[%s0 + $0x148] sm:$0xff]
    %v72 = vld [vmem:[%s0 + $0x150] sm:$0xff]
    %v73 = vld [vmem:[%s0 + $0x158] sm:$0xff]
    %v74 = vld [vmem:[%s0 + $0x160] sm:$0xff]
    %v75 = vld [vmem:[%s0 + $0x168] sm:$0xff]
    %v76 = vld [vmem:[%s0 + $0x170] sm:$0xff]
    %v77 = vld [vmem:[%s0 + $0x178] sm:$0xff]
    %v78 = vld [vmem:[%s0 + $0x180] sm:$0xff]
    %v79 = vld [vmem:[%s0 + $0x188] sm:$0xff]
    %v80 = vld [vmem:[%s0 + $0x190] sm:$0xff]
    %v81 = vld [vmem:[%s0 + $0x198] sm:$0xff]
    %v82 = vld [vmem:[%s0 + $0x1a0] sm:$0xff]
    %v83 = vld [vmem:[%s0 + $0x1a8] sm:$0xff]
    %v84 = vld [vmem:[%s0 + $0x1b0] sm:$0xff]
    %v85 = vld [vmem:[%s0 + $0x1b8] sm:$0xff]
    %v86 = vld [vmem:[%s0 + $0x1c0] sm:$0xff]
    %v87 = vld [vmem:[%s0 + $0x1c8] sm:$0xff]
    %v88 = vld [vmem:[%s0 + $0x1d0] sm:$0xff]
    %v89 = vld [vmem:[%s0 + $0x1d8] sm:$0xff]
    %v90 = vld [vmem:[%s0 + $0x1e0] sm:$0xff]
    %v91 = vld [vmem:[%s0 + $0x1e8] sm:$0xff]
    %v92 = vld [vmem:[%s0 + $0x1f0] sm:$0xff]
    %v93 = vld [vmem:[%s0 + $0x1f8] sm:$0xff]
    %v94 = vld [vmem:[%s1] sm:$0xf]
    %vm95 = vcmask 31744
    %v97 = vsel %vm95, %v30, 0
    %v100 = vsel %vm95, %v31, 0
    %v103 = vsel %vm95, %v32, 0
    %v106 = vsel %vm95, %v33, 0
    %v109 = vsel %vm95, %v34, 0
    %v112 = vsel %vm95, %v35, 0
    %v115 = vsel %vm95, %v36, 0
    %v118 = vsel %vm95, %v37, 0
    %v121 = vsel %vm95, %v38, 0
    %v124 = vsel %vm95, %v39, 0
    %v127 = vsel %vm95, %v40, 0
    %v130 = vsel %vm95, %v41, 0
    %v133 = vsel %vm95, %v42, 0
    %v136 = vsel %vm95, %v43, 0
    %v139 = vsel %vm95, %v44, 0
    %v142 = vsel %vm95, %v45, 0
    %v145 = vsel %vm95, %v46, 0
    %v148 = vsel %vm95, %v47, 0
    %v151 = vsel %vm95, %v48, 0
    %v154 = vsel %vm95, %v49, 0
    %v157 = vsel %vm95, %v50, 0
    %v160 = vsel %vm95, %v51, 0
    %v163 = vsel %vm95, %v52, 0
    %v166 = vsel %vm95, %v53, 0
    %v169 = vsel %vm95, %v54, 0
    %v172 = vsel %vm95, %v55, 0
    %v175 = vsel %vm95, %v56, 0
    %v178 = vsel %vm95, %v57, 0
    %v181 = vsel %vm95, %v58, 0
    %v184 = vsel %vm95, %v59, 0
    %v187 = vsel %vm95, %v60, 0
    %v190 = vsel %vm95, %v61, 0
    %v193 = vsel %vm95, %v62, 0
    %v196 = vsel %vm95, %v63, 0
    %v199 = vsel %vm95, %v64, 0
    %v202 = vsel %vm95, %v65, 0
    %v205 = vsel %vm95, %v66, 0
    %v208 = vsel %vm95, %v67, 0
    %v211 = vsel %vm95, %v68, 0
    %v214 = vsel %vm95, %v69, 0
    %v217 = vsel %vm95, %v70, 0
    %v220 = vsel %vm95, %v71, 0
    %v223 = vsel %vm95, %v72, 0
    %v226 = vsel %vm95, %v73, 0
    %v229 = vsel %vm95, %v74, 0
    %v232 = vsel %vm95, %v75, 0
    %v235 = vsel %vm95, %v76, 0
    %v238 = vsel %vm95, %v77, 0
    %v241 = vsel %vm95, %v78, 0
    %v244 = vsel %vm95, %v79, 0
    %v247 = vsel %vm95, %v80, 0
    %v250 = vsel %vm95, %v81, 0
    %v253 = vsel %vm95, %v82, 0
    %v256 = vsel %vm95, %v83, 0
    %v259 = vsel %vm95, %v84, 0
    %v262 = vsel %vm95, %v85, 0
    %v265 = vsel %vm95, %v86, 0
    %v268 = vsel %vm95, %v87, 0
    %v271 = vsel %vm95, %v88, 0
    %v274 = vsel %vm95, %v89, 0
    %v277 = vsel %vm95, %v90, 0
    %v280 = vsel %vm95, %v91, 0
    %v283 = vsel %vm95, %v92, 0
    %v286 = vsel %vm95, %v93, 0
    %vm288 = vcmask 1043456
    %v290 = vsel %vm288, %v94, 0
    %292 = vmatprep.subr.mxu0 0.0
    %293 = vmatpush1.msra.mxu0 0.0
    %294 = vmatprep.subr.mxu0 0.0
    %295 = vmatpush1.msra.mxu0 0.0
    %296 = vmatprep.subr.mxu0 0.0
    %297 = vmatpush1.msra.mxu0 0.0
    %298 = vmatprep.subr.mxu0 0.0
    %299 = vmatpush1.msra.mxu0 0.0
    %300 = vmatprep.subr.mxu0 0.0
    %301 = vmatpush1.msra.mxu0 0.0
    %302 = vmatprep.subr.mxu0 0.0
    %303 = vmatpush1.msra.mxu0 0.0
    %304 = vmatprep.subr.mxu0 0.0
    %305 = vmatpush1.msra.mxu0 0.0
    %306 = vmatprep.subr.mxu0 0.0
    %307 = vmatpush1.msra.mxu0 0.0
    %308 = vmatprep.subr.mxu0 0.0
    %309 = vmatpush1.msra.mxu0 0.0
    %310 = vmatprep.subr.mxu0 0.0
    %311 = vmatpush1.msra.mxu0 0.0
    %312 = vmatprep.subr.mxu0 0.0
    %313 = vmatpush1.msra.mxu0 0.0
    %314 = vmatprep.subr.mxu0 0.0
    %315 = vmatpush1.msra.mxu0 0.0
    %316 = vmatprep.subr.mxu0 0.0
    %317 = vmatpush1.msra.mxu0 0.0
    %318 = vmatprep.subr.mxu0 0.0
    %319 = vmatpush1.msra.mxu0 0.0
    %320 = vmatprep.subr.mxu0 0.0
    %321 = vmatpush1.msra.mxu0 0.0
    %322 = vmatprep.subr.mxu0 0.0
    %323 = vmatpush1.msra.mxu0 %v290
    %324 = vmatprep.subr.mxu0 0.0
    %325 = vmatpush2.msra.mxu0 0.0
    %326 = vmatprep.subr.mxu0 0.0
    %327 = vmatpush2.msra.mxu0 0.0
    %328 = vmatprep.subr.mxu0 0.0
    %329 = vmatpush2.msra.mxu0 0.0
    %330 = vmatprep.subr.mxu0 0.0
    %331 = vmatpush2.msra.mxu0 0.0
    %332 = vmatprep.subr.mxu0 0.0
    %333 = vmatpush2.msra.mxu0 0.0
    %334 = vmatprep.subr.mxu0 0.0
    %335 = vmatpush2.msra.mxu0 0.0
    %336 = vmatprep.subr.mxu0 0.0
    %337 = vmatpush2.msra.mxu0 0.0
    %338 = vmatprep.subr.mxu0 0.0
    %339 = vmatpush2.msra.mxu0 0.0
    %340 = vmatprep.subr.mxu0 0.0
    %341 = vmatpush2.msra.mxu0 0.0
    %342 = vmatprep.subr.mxu0 0.0
    %343 = vmatpush2.msra.mxu0 0.0
    %344 = vmatprep.subr.mxu0 0.0
    %345 = vmatpush2.msra.mxu0 0.0
    %346 = vmatprep.subr.mxu0 0.0
    %347 = vmatpush2.msra.mxu0 0.0
    %348 = vmatprep.subr.mxu0 0.0
    %349 = vmatpush2.msra.mxu0 0.0
    %350 = vmatprep.subr.mxu0 0.0
    %351 = vmatpush2.msra.mxu0 0.0
    %352 = vmatprep.subr.mxu0 0.0
    %353 = vmatpush2.msra.mxu0 0.0
    %354 = vmatprep.subr.mxu0 0.0
    %355 = vmatpush2.msra.mxu0 0.0
    %356 = vmatprep.mubr.f32.mxu0 0.0
    %357 = vmatmul.mubr.f32.gmra.mxu0 %v97
    %v358 = vpop.f32.mrf.mxu0
    %v359 = vadd.f32 0.0, %v358
    %v360 = vpop.f32.mrf.mxu0
    %361 = vmatprep.mubr.f32.mxu0 0.0
    %362 = vmatmul.mubr.f32.gmra.mxu0 %v100
    %v363 = vpop.f32.mrf.mxu0
    %v364 = vadd.f32 0.0, %v363
    %v365 = vpop.f32.mrf.mxu0
    %366 = vmatprep.mubr.f32.mxu0 0.0
    %367 = vmatmul.mubr.f32.gmra.mxu0 %v103
    %v368 = vpop.f32.mrf.mxu0
    %v369 = vadd.f32 0.0, %v368
    %v370 = vpop.f32.mrf.mxu0
    %371 = vmatprep.mubr.f32.mxu0 0.0
    %372 = vmatmul.mubr.f32.gmra.mxu0 %v106
    %v373 = vpop.f32.mrf.mxu0
    %v374 = vadd.f32 0.0, %v373
    %v375 = vpop.f32.mrf.mxu0
    %376 = vmatprep.mubr.f32.mxu0 0.0
    %377 = vmatmul.mubr.f32.gmra.mxu0 %v109
    %v378 = vpop.f32.mrf.mxu0
    %v379 = vadd.f32 0.0, %v378
    %v380 = vpop.f32.mrf.mxu0
    %381 = vmatprep.mubr.f32.mxu0 0.0
    %382 = vmatmul.mubr.f32.gmra.mxu0 %v112
    %v383 = vpop.f32.mrf.mxu0
    %v384 = vadd.f32 0.0, %v383
    %v385 = vpop.f32.mrf.mxu0
    %386 = vmatprep.mubr.f32.mxu0 0.0
    %387 = vmatmul.mubr.f32.gmra.mxu0 %v115
    %v388 = vpop.f32.mrf.mxu0
    %v389 = vadd.f32 0.0, %v388
    %v390 = vpop.f32.mrf.mxu0
    %391 = vmatprep.mubr.f32.mxu0 0.0
    %392 = vmatmul.mubr.f32.gmra.mxu0 %v118
    %v393 = vpop.f32.mrf.mxu0
    %v394 = vadd.f32 0.0, %v393
    %v395 = vpop.f32.mrf.mxu0
    %396 = vmatprep.mubr.f32.mxu0 0.0
    %397 = vmatmul.mubr.f32.gmra.mxu0 %v121
    %v398 = vpop.f32.mrf.mxu0
    %v399 = vadd.f32 0.0, %v398
    %v400 = vpop.f32.mrf.mxu0
    %401 = vmatprep.mubr.f32.mxu0 0.0
    %402 = vmatmul.mubr.f32.gmra.mxu0 %v124
    %v403 = vpop.f32.mrf.mxu0
    %v404 = vadd.f32 0.0, %v403
    %v405 = vpop.f32.mrf.mxu0
    %406 = vmatprep.mubr.f32.mxu0 0.0
    %407 = vmatmul.mubr.f32.gmra.mxu0 %v127
    %v408 = vpop.f32.mrf.mxu0
    %v409 = vadd.f32 0.0, %v408
    %v410 = vpop.f32.mrf.mxu0
    %411 = vmatprep.mubr.f32.mxu0 0.0
    %412 = vmatmul.mubr.f32.gmra.mxu0 %v130
    %v413 = vpop.f32.mrf.mxu0
    %v414 = vadd.f32 0.0, %v413
    %v415 = vpop.f32.mrf.mxu0
    %416 = vmatprep.mubr.f32.mxu0 0.0
    %417 = vmatmul.mubr.f32.gmra.mxu0 %v133
    %v418 = vpop.f32.mrf.mxu0
    %v419 = vadd.f32 0.0, %v418
    %v420 = vpop.f32.mrf.mxu0
    %421 = vmatprep.mubr.f32.mxu0 0.0
    %422 = vmatmul.mubr.f32.gmra.mxu0 %v136
    %v423 = vpop.f32.mrf.mxu0
    %v424 = vadd.f32 0.0, %v423
    %v425 = vpop.f32.mrf.mxu0
    %426 = vmatprep.mubr.f32.mxu0 0.0
    %427 = vmatmul.mubr.f32.gmra.mxu0 %v139
    %v428 = vpop.f32.mrf.mxu0
    %v429 = vadd.f32 0.0, %v428
    %v430 = vpop.f32.mrf.mxu0
    %431 = vmatprep.mubr.f32.mxu0 0.0
    %432 = vmatmul.mubr.f32.gmra.mxu0 %v142
    %v433 = vpop.f32.mrf.mxu0
    %v434 = vadd.f32 0.0, %v433
    %v435 = vpop.f32.mrf.mxu0
    %436 = vmatprep.mubr.f32.mxu0 0.0
    %437 = vmatmul.mubr.f32.gmra.mxu0 %v145
    %v438 = vpop.f32.mrf.mxu0
    %v439 = vadd.f32 0.0, %v438
    %v440 = vpop.f32.mrf.mxu0
    %441 = vmatprep.mubr.f32.mxu0 0.0
    %442 = vmatmul.mubr.f32.gmra.mxu0 %v148
    %v443 = vpop.f32.mrf.mxu0
    %v444 = vadd.f32 0.0, %v443
    %v445 = vpop.f32.mrf.mxu0
    %446 = vmatprep.mubr.f32.mxu0 0.0
    %447 = vmatmul.mubr.f32.gmra.mxu0 %v151
    %v448 = vpop.f32.mrf.mxu0
    %v449 = vadd.f32 0.0, %v448
    %v450 = vpop.f32.mrf.mxu0
    %451 = vmatprep.mubr.f32.mxu0 0.0
    %452 = vmatmul.mubr.f32.gmra.mxu0 %v154
    %v453 = vpop.f32.mrf.mxu0
    %v454 = vadd.f32 0.0, %v453
    %v455 = vpop.f32.mrf.mxu0
    %456 = vmatprep.mubr.f32.mxu0 0.0
    %457 = vmatmul.mubr.f32.gmra.mxu0 %v157
    %v458 = vpop.f32.mrf.mxu0
    %v459 = vadd.f32 0.0, %v458
    %v460 = vpop.f32.mrf.mxu0
    %461 = vmatprep.mubr.f32.mxu0 0.0
    %462 = vmatmul.mubr.f32.gmra.mxu0 %v160
    %v463 = vpop.f32.mrf.mxu0
    %v464 = vadd.f32 0.0, %v463
    %v465 = vpop.f32.mrf.mxu0
    %466 = vmatprep.mubr.f32.mxu0 0.0
    %467 = vmatmul.mubr.f32.gmra.mxu0 %v163
    %v468 = vpop.f32.mrf.mxu0
    %v469 = vadd.f32 0.0, %v468
    %v470 = vpop.f32.mrf.mxu0
    %471 = vmatprep.mubr.f32.mxu0 0.0
    %472 = vmatmul.mubr.f32.gmra.mxu0 %v166
    %v473 = vpop.f32.mrf.mxu0
    %v474 = vadd.f32 0.0, %v473
    %v475 = vpop.f32.mrf.mxu0
    %476 = vmatprep.mubr.f32.mxu0 0.0
    %477 = vmatmul.mubr.f32.gmra.mxu0 %v169
    %v478 = vpop.f32.mrf.mxu0
    %v479 = vadd.f32 0.0, %v478
    %v480 = vpop.f32.mrf.mxu0
    %481 = vmatprep.mubr.f32.mxu0 0.0
    %482 = vmatmul.mubr.f32.gmra.mxu0 %v172
    %v483 = vpop.f32.mrf.mxu0
    %v484 = vadd.f32 0.0, %v483
    %v485 = vpop.f32.mrf.mxu0
    %486 = vmatprep.mubr.f32.mxu0 0.0
    %487 = vmatmul.mubr.f32.gmra.mxu0 %v175
    %v488 = vpop.f32.mrf.mxu0
    %v489 = vadd.f32 0.0, %v488
    %v490 = vpop.f32.mrf.mxu0
    %491 = vmatprep.mubr.f32.mxu0 0.0
    %492 = vmatmul.mubr.f32.gmra.mxu0 %v178
    %v493 = vpop.f32.mrf.mxu0
    %v494 = vadd.f32 0.0, %v493
    %v495 = vpop.f32.mrf.mxu0
    %496 = vmatprep.mubr.f32.mxu0 0.0
    %497 = vmatmul.mubr.f32.gmra.mxu0 %v181
    %v498 = vpop.f32.mrf.mxu0
    %v499 = vadd.f32 0.0, %v498
    %v500 = vpop.f32.mrf.mxu0
    %501 = vmatprep.mubr.f32.mxu0 0.0
    %502 = vmatmul.mubr.f32.gmra.mxu0 %v184
    %v503 = vpop.f32.mrf.mxu0
    %v504 = vadd.f32 0.0, %v503
    %v505 = vpop.f32.mrf.mxu0
    %506 = vmatprep.mubr.f32.mxu0 0.0
    %507 = vmatmul.mubr.f32.gmra.mxu0 %v187
    %v508 = vpop.f32.mrf.mxu0
    %v509 = vadd.f32 0.0, %v508
    %v510 = vpop.f32.mrf.mxu0
    %511 = vmatprep.mubr.f32.mxu0 0.0
    %512 = vmatmul.mubr.f32.gmra.mxu0 %v190
    %v513 = vpop.f32.mrf.mxu0
    %v514 = vadd.f32 0.0, %v513
    %v515 = vpop.f32.mrf.mxu0
    %516 = vmatprep.mubr.f32.mxu0 0.0
    %517 = vmatmul.mubr.f32.gmra.mxu0 %v193
    %v518 = vpop.f32.mrf.mxu0
    %v519 = vadd.f32 0.0, %v518
    %v520 = vpop.f32.mrf.mxu0
    %521 = vmatprep.mubr.f32.mxu0 0.0
    %522 = vmatmul.mubr.f32.gmra.mxu0 %v196
    %v523 = vpop.f32.mrf.mxu0
    %v524 = vadd.f32 0.0, %v523
    %v525 = vpop.f32.mrf.mxu0
    %526 = vmatprep.mubr.f32.mxu0 0.0
    %527 = vmatmul.mubr.f32.gmra.mxu0 %v199
    %v528 = vpop.f32.mrf.mxu0
    %v529 = vadd.f32 0.0, %v528
    %v530 = vpop.f32.mrf.mxu0
    %531 = vmatprep.mubr.f32.mxu0 0.0
    %532 = vmatmul.mubr.f32.gmra.mxu0 %v202
    %v533 = vpop.f32.mrf.mxu0
    %v534 = vadd.f32 0.0, %v533
    %v535 = vpop.f32.mrf.mxu0
    %536 = vmatprep.mubr.f32.mxu0 0.0
    %537 = vmatmul.mubr.f32.gmra.mxu0 %v205
    %v538 = vpop.f32.mrf.mxu0
    %v539 = vadd.f32 0.0, %v538
    %v540 = vpop.f32.mrf.mxu0
    %541 = vmatprep.mubr.f32.mxu0 0.0
    %542 = vmatmul.mubr.f32.gmra.mxu0 %v208
    %v543 = vpop.f32.mrf.mxu0
    %v544 = vadd.f32 0.0, %v543
    %v545 = vpop.f32.mrf.mxu0
    %546 = vmatprep.mubr.f32.mxu0 0.0
    %547 = vmatmul.mubr.f32.gmra.mxu0 %v211
    %v548 = vpop.f32.mrf.mxu0
    %v549 = vadd.f32 0.0, %v548
    %v550 = vpop.f32.mrf.mxu0
    %551 = vmatprep.mubr.f32.mxu0 0.0
    %552 = vmatmul.mubr.f32.gmra.mxu0 %v214
    %v553 = vpop.f32.mrf.mxu0
    %v554 = vadd.f32 0.0, %v553
    %v555 = vpop.f32.mrf.mxu0
    %556 = vmatprep.mubr.f32.mxu0 0.0
    %557 = vmatmul.mubr.f32.gmra.mxu0 %v217
    %v558 = vpop.f32.mrf.mxu0
    %v559 = vadd.f32 0.0, %v558
    %v560 = vpop.f32.mrf.mxu0
    %561 = vmatprep.mubr.f32.mxu0 0.0
    %562 = vmatmul.mubr.f32.gmra.mxu0 %v220
    %v563 = vpop.f32.mrf.mxu0
    %v564 = vadd.f32 0.0, %v563
    %v565 = vpop.f32.mrf.mxu0
    %566 = vmatprep.mubr.f32.mxu0 0.0
    %567 = vmatmul.mubr.f32.gmra.mxu0 %v223
    %v568 = vpop.f32.mrf.mxu0
    %v569 = vadd.f32 0.0, %v568
    %v570 = vpop.f32.mrf.mxu0
    %571 = vmatprep.mubr.f32.mxu0 0.0
    %572 = vmatmul.mubr.f32.gmra.mxu0 %v226
    %v573 = vpop.f32.mrf.mxu0
    %v574 = vadd.f32 0.0, %v573
    %v575 = vpop.f32.mrf.mxu0
    %576 = vmatprep.mubr.f32.mxu0 0.0
    %577 = vmatmul.mubr.f32.gmra.mxu0 %v229
    %v578 = vpop.f32.mrf.mxu0
    %v579 = vadd.f32 0.0, %v578
    %v580 = vpop.f32.mrf.mxu0
    %581 = vmatprep.mubr.f32.mxu0 0.0
    %582 = vmatmul.mubr.f32.gmra.mxu0 %v232
    %v583 = vpop.f32.mrf.mxu0
    %v584 = vadd.f32 0.0, %v583
    %v585 = vpop.f32.mrf.mxu0
    %586 = vmatprep.mubr.f32.mxu0 0.0
    %587 = vmatmul.mubr.f32.gmra.mxu0 %v235
    %v588 = vpop.f32.mrf.mxu0
    %v589 = vadd.f32 0.0, %v588
    %v590 = vpop.f32.mrf.mxu0
    %591 = vmatprep.mubr.f32.mxu0 0.0
    %592 = vmatmul.mubr.f32.gmra.mxu0 %v238
    %v593 = vpop.f32.mrf.mxu0
    %v594 = vadd.f32 0.0, %v593
    %v595 = vpop.f32.mrf.mxu0
    %596 = vmatprep.mubr.f32.mxu0 0.0
    %597 = vmatmul.mubr.f32.gmra.mxu0 %v241
    %v598 = vpop.f32.mrf.mxu0
    %v599 = vadd.f32 0.0, %v598
    %v600 = vpop.f32.mrf.mxu0
    %601 = vmatprep.mubr.f32.mxu0 0.0
    %602 = vmatmul.mubr.f32.gmra.mxu0 %v244
    %v603 = vpop.f32.mrf.mxu0
    %v604 = vadd.f32 0.0, %v603
    %v605 = vpop.f32.mrf.mxu0
    %606 = vmatprep.mubr.f32.mxu0 0.0
    %607 = vmatmul.mubr.f32.gmra.mxu0 %v247
    %v608 = vpop.f32.mrf.mxu0
    %v609 = vadd.f32 0.0, %v608
    %v610 = vpop.f32.mrf.mxu0
    %611 = vmatprep.mubr.f32.mxu0 0.0
    %612 = vmatmul.mubr.f32.gmra.mxu0 %v250
    %v613 = vpop.f32.mrf.mxu0
    %v614 = vadd.f32 0.0, %v613
    %v615 = vpop.f32.mrf.mxu0
    %616 = vmatprep.mubr.f32.mxu0 0.0
    %617 = vmatmul.mubr.f32.gmra.mxu0 %v253
    %v618 = vpop.f32.mrf.mxu0
    %v619 = vadd.f32 0.0, %v618
    %v620 = vpop.f32.mrf.mxu0
    %621 = vmatprep.mubr.f32.mxu0 0.0
    %622 = vmatmul.mubr.f32.gmra.mxu0 %v256
    %v623 = vpop.f32.mrf.mxu0
    %v624 = vadd.f32 0.0, %v623
    %v625 = vpop.f32.mrf.mxu0
    %626 = vmatprep.mubr.f32.mxu0 0.0
    %627 = vmatmul.mubr.f32.gmra.mxu0 %v259
    %v628 = vpop.f32.mrf.mxu0
    %v629 = vadd.f32 0.0, %v628
    %v630 = vpop.f32.mrf.mxu0
    %631 = vmatprep.mubr.f32.mxu0 0.0
    %632 = vmatmul.mubr.f32.gmra.mxu0 %v262
    %v633 = vpop.f32.mrf.mxu0
    %v634 = vadd.f32 0.0, %v633
    %v635 = vpop.f32.mrf.mxu0
    %636 = vmatprep.mubr.f32.mxu0 0.0
    %637 = vmatmul.mubr.f32.gmra.mxu0 %v265
    %v638 = vpop.f32.mrf.mxu0
    %v639 = vadd.f32 0.0, %v638
    %v640 = vpop.f32.mrf.mxu0
    %641 = vmatprep.mubr.f32.mxu0 0.0
    %642 = vmatmul.mubr.f32.gmra.mxu0 %v268
    %v643 = vpop.f32.mrf.mxu0
    %v644 = vadd.f32 0.0, %v643
    %v645 = vpop.f32.mrf.mxu0
    %646 = vmatprep.mubr.f32.mxu0 0.0
    %647 = vmatmul.mubr.f32.gmra.mxu0 %v271
    %v648 = vpop.f32.mrf.mxu0
    %v649 = vadd.f32 0.0, %v648
    %v650 = vpop.f32.mrf.mxu0
    %651 = vmatprep.mubr.f32.mxu0 0.0
    %652 = vmatmul.mubr.f32.gmra.mxu0 %v274
    %v653 = vpop.f32.mrf.mxu0
    %v654 = vadd.f32 0.0, %v653
    %v655 = vpop.f32.mrf.mxu0
    %656 = vmatprep.mubr.f32.mxu0 0.0
    %657 = vmatmul.mubr.f32.gmra.mxu0 %v277
    %v658 = vpop.f32.mrf.mxu0
    %v659 = vadd.f32 0.0, %v658
    %v660 = vpop.f32.mrf.mxu0
    %661 = vmatprep.mubr.f32.mxu0 0.0
    %662 = vmatmul.mubr.f32.gmra.mxu0 %v280
    %v663 = vpop.f32.mrf.mxu0
    %v664 = vadd.f32 0.0, %v663
    %v665 = vpop.f32.mrf.mxu0
    %666 = vmatprep.mubr.f32.mxu0 0.0
    %667 = vmatmul.mubr.f32.gmra.mxu0 %v283
    %v668 = vpop.f32.mrf.mxu0
    %v669 = vadd.f32 0.0, %v668
    %v670 = vpop.f32.mrf.mxu0
    %671 = vmatprep.mubr.f32.mxu0 0.0
    %672 = vmatmul.mubr.f32.gmra.mxu0 %v286
    %v673 = vpop.f32.mrf.mxu0
    %v674 = vadd.f32 0.0, %v673
    %v675 = vpop.f32.mrf.mxu0
    %676 = vdwg.mxu0
    %v677 = vmax.f32 %v359, 0.0
    %v678 = vmax.f32 %v364, 0.0
    %v679 = vmax.f32 %v369, 0.0
    %v680 = vmax.f32 %v374, 0.0
    %v681 = vmax.f32 %v379, 0.0
    %v682 = vmax.f32 %v384, 0.0
    %v683 = vmax.f32 %v389, 0.0
    %v684 = vmax.f32 %v394, 0.0
    %v685 = vmax.f32 %v399, 0.0
    %v686 = vmax.f32 %v404, 0.0
    %v687 = vmax.f32 %v409, 0.0
    %v688 = vmax.f32 %v414, 0.0
    %v689 = vmax.f32 %v419, 0.0
    %v690 = vmax.f32 %v424, 0.0
    %v691 = vmax.f32 %v429, 0.0
    %v692 = vmax.f32 %v434, 0.0
    %v693 = vmax.f32 %v439, 0.0
    %v694 = vmax.f32 %v444, 0.0
    %v695 = vmax.f32 %v449, 0.0
    %v696 = vmax.f32 %v454, 0.0
    %v697 = vmax.f32 %v459, 0.0
    %v698 = vmax.f32 %v464, 0.0
    %v699 = vmax.f32 %v469, 0.0
    %v700 = vmax.f32 %v474, 0.0
    %v701 = vmax.f32 %v479, 0.0
    %v702 = vmax.f32 %v484, 0.0
    %v703 = vmax.f32 %v489, 0.0
    %v704 = vmax.f32 %v494, 0.0
    %v705 = vmax.f32 %v499, 0.0
    %v706 = vmax.f32 %v504, 0.0
    %v707 = vmax.f32 %v509, 0.0
    %v708 = vmax.f32 %v514, 0.0
    %v709 = vmax.f32 %v519, 0.0
    %v710 = vmax.f32 %v524, 0.0
    %v711 = vmax.f32 %v529, 0.0
    %v712 = vmax.f32 %v534, 0.0
    %v713 = vmax.f32 %v539, 0.0
    %v714 = vmax.f32 %v544, 0.0
    %v715 = vmax.f32 %v549, 0.0
    %v716 = vmax.f32 %v554, 0.0
    %v717 = vmax.f32 %v559, 0.0
    %v718 = vmax.f32 %v564, 0.0
    %v719 = vmax.f32 %v569, 0.0
    %v720 = vmax.f32 %v574, 0.0
    %v721 = vmax.f32 %v579, 0.0
    %v722 = vmax.f32 %v584, 0.0
    %v723 = vmax.f32 %v589, 0.0
    %v724 = vmax.f32 %v594, 0.0
    %v725 = vmax.f32 %v599, 0.0
    %v726 = vmax.f32 %v604, 0.0
    %v727 = vmax.f32 %v609, 0.0
    %v728 = vmax.f32 %v614, 0.0
    %v729 = vmax.f32 %v619, 0.0
    %v730 = vmax.f32 %v624, 0.0
    %v731 = vmax.f32 %v629, 0.0
    %v732 = vmax.f32 %v634, 0.0
    %v733 = vmax.f32 %v639, 0.0
    %v734 = vmax.f32 %v644, 0.0
    %v735 = vmax.f32 %v649, 0.0
    %v736 = vmax.f32 %v654, 0.0
    %v737 = vmax.f32 %v659, 0.0
    %v738 = vmax.f32 %v664, 0.0
    %v739 = vmax.f32 %v669, 0.0
    %v740 = vmax.f32 %v674, 0.0
    %v741 = vld [vmem:[%s2] sm:$0xff]
    %v742 = vld [vmem:[%s2 + $0x8] sm:$0xff]
    %v743 = vld [vmem:[%s2 + $0x10] sm:$0xff]
    %v744 = vld [vmem:[%s2 + $0x18] sm:$0xff]
    %vm745 = vcmask 261120
    %v747 = vsel %vm745, %v677, 0
    %v750 = vsel %vm745, %v678, 0
    %v753 = vsel %vm745, %v679, 0
    %v756 = vsel %vm745, %v680, 0
    %v759 = vsel %vm745, %v681, 0
    %v762 = vsel %vm745, %v682, 0
    %v765 = vsel %vm745, %v683, 0
    %v768 = vsel %vm745, %v684, 0
    %v771 = vsel %vm745, %v685, 0
    %v774 = vsel %vm745, %v686, 0
    %v777 = vsel %vm745, %v687, 0
    %v780 = vsel %vm745, %v688, 0
    %v783 = vsel %vm745, %v689, 0
    %v786 = vsel %vm745, %v690, 0
    %v789 = vsel %vm745, %v691, 0
    %v792 = vsel %vm745, %v692, 0
    %v795 = vsel %vm745, %v693, 0
    %v798 = vsel %vm745, %v694, 0
    %v801 = vsel %vm745, %v695, 0
    %v804 = vsel %vm745, %v696, 0
    %v807 = vsel %vm745, %v697, 0
    %v810 = vsel %vm745, %v698, 0
    %v813 = vsel %vm745, %v699, 0
    %v816 = vsel %vm745, %v700, 0
    %v819 = vsel %vm745, %v701, 0
    %v822 = vsel %vm745, %v702, 0
    %v825 = vsel %vm745, %v703, 0
    %v828 = vsel %vm745, %v704, 0
    %v831 = vsel %vm745, %v705, 0
    %v834 = vsel %vm745, %v706, 0
    %v837 = vsel %vm745, %v707, 0
    %v840 = vsel %vm745, %v708, 0
    %v843 = vsel %vm745, %v709, 0
    %v846 = vsel %vm745, %v710, 0
    %v849 = vsel %vm745, %v711, 0
    %v852 = vsel %vm745, %v712, 0
    %v855 = vsel %vm745, %v713, 0
    %v858 = vsel %vm745, %v714, 0
    %v861 = vsel %vm745, %v715, 0
    %v864 = vsel %vm745, %v716, 0
    %v867 = vsel %vm745, %v717, 0
    %v870 = vsel %vm745, %v718, 0
    %v873 = vsel %vm745, %v719, 0
    %v876 = vsel %vm745, %v720, 0
    %v879 = vsel %vm745, %v721, 0
    %v882 = vsel %vm745, %v722, 0
    %v885 = vsel %vm745, %v723, 0
    %v888 = vsel %vm745, %v724, 0
    %v891 = vsel %vm745, %v725, 0
    %v894 = vsel %vm745, %v726, 0
    %v897 = vsel %vm745, %v727, 0
    %v900 = vsel %vm745, %v728, 0
    %v903 = vsel %vm745, %v729, 0
    %v906 = vsel %vm745, %v730, 0
    %v909 = vsel %vm745, %v731, 0
    %v912 = vsel %vm745, %v732, 0
    %v915 = vsel %vm745, %v733, 0
    %v918 = vsel %vm745, %v734, 0
    %v921 = vsel %vm745, %v735, 0
    %v924 = vsel %vm745, %v736, 0
    %v927 = vsel %vm745, %v737, 0
    %v930 = vsel %vm745, %v738, 0
    %v933 = vsel %vm745, %v739, 0
    %v936 = vsel %vm745, %v740, 0
    %938 = vmatprep.subr.mxu0 0.0
    %939 = vmatpush1.msra.mxu0 0.0
    %940 = vmatprep.subr.mxu0 0.0
    %941 = vmatpush1.msra.mxu0 0.0
    %942 = vmatprep.subr.mxu0 0.0
    %943 = vmatpush1.msra.mxu0 0.0
    %944 = vmatprep.subr.mxu0 0.0
    %945 = vmatpush1.msra.mxu0 0.0
    %946 = vmatprep.subr.mxu0 0.0
    %947 = vmatpush1.msra.mxu0 0.0
    %948 = vmatprep.subr.mxu0 0.0
    %949 = vmatpush1.msra.mxu0 0.0
    %950 = vmatprep.subr.mxu0 0.0
    %951 = vmatpush1.msra.mxu0 0.0
    %952 = vmatprep.subr.mxu0 0.0
    %953 = vmatpush1.msra.mxu0 0.0
    %954 = vmatprep.subr.mxu0 0.0
    %955 = vmatpush1.msra.mxu0 0.0
    %956 = vmatprep.subr.mxu0 0.0
    %957 = vmatpush1.msra.mxu0 0.0
    %958 = vmatprep.subr.mxu0 0.0
    %959 = vmatpush1.msra.mxu0 0.0
    %960 = vmatprep.subr.mxu0 0.0
    %961 = vmatpush1.msra.mxu0 0.0
    %962 = vmatprep.subr.mxu0 0.0
    %963 = vmatpush1.msra.mxu0 %v744
    %964 = vmatprep.subr.mxu0 0.0
    %965 = vmatpush1.msra.mxu0 %v743
    %966 = vmatprep.subr.mxu0 0.0
    %967 = vmatpush1.msra.mxu0 %v742
    %968 = vmatprep.subr.mxu0 0.0
    %969 = vmatpush1.msra.mxu0 %v741
    %970 = vmatprep.subr.mxu0 0.0
    %971 = vmatpush2.msra.mxu0 0.0
    %972 = vmatprep.subr.mxu0 0.0
    %973 = vmatpush2.msra.mxu0 0.0
    %974 = vmatprep.subr.mxu0 0.0
    %975 = vmatpush2.msra.mxu0 0.0
    %976 = vmatprep.subr.mxu0 0.0
    %977 = vmatpush2.msra.mxu0 0.0
    %978 = vmatprep.subr.mxu0 0.0
    %979 = vmatpush2.msra.mxu0 0.0
    %980 = vmatprep.subr.mxu0 0.0
    %981 = vmatpush2.msra.mxu0 0.0
    %982 = vmatprep.subr.mxu0 0.0
    %983 = vmatpush2.msra.mxu0 0.0
    %984 = vmatprep.subr.mxu0 0.0
    %985 = vmatpush2.msra.mxu0 0.0
    %986 = vmatprep.subr.mxu0 0.0
    %987 = vmatpush2.msra.mxu0 0.0
    %988 = vmatprep.subr.mxu0 0.0
    %989 = vmatpush2.msra.mxu0 0.0
    %990 = vmatprep.subr.mxu0 0.0
    %991 = vmatpush2.msra.mxu0 0.0
    %992 = vmatprep.subr.mxu0 0.0
    %993 = vmatpush2.msra.mxu0 0.0
    %994 = vmatprep.subr.mxu0 0.0
    %995 = vmatpush2.msra.mxu0 0.0
    %996 = vmatprep.subr.mxu0 0.0
    %997 = vmatpush2.msra.mxu0 0.0
    %998 = vmatprep.subr.mxu0 0.0
    %999 = vmatpush2.msra.mxu0 0.0
    %1000 = vmatprep.subr.mxu0 0.0
    %1001 = vmatpush2.msra.mxu0 0.0
    %1002 = vmatprep.mubr.f32.mxu0 0.0
    %1003 = vmatmul.mubr.f32.gmra.mxu0 %v747
    %v1004 = vpop.f32.mrf.mxu0
    %v1005 = vadd.f32 0.0, %v1004
    %v1006 = vpop.f32.mrf.mxu0
    %1007 = vmatprep.mubr.f32.mxu0 0.0
    %1008 = vmatmul.mubr.f32.gmra.mxu0 %v750
    %v1009 = vpop.f32.mrf.mxu0
    %v1010 = vadd.f32 0.0, %v1009
    %v1011 = vpop.f32.mrf.mxu0
    %1012 = vmatprep.mubr.f32.mxu0 0.0
    %1013 = vmatmul.mubr.f32.gmra.mxu0 %v753
    %v1014 = vpop.f32.mrf.mxu0
    %v1015 = vadd.f32 0.0, %v1014
    %v1016 = vpop.f32.mrf.mxu0
    %1017 = vmatprep.mubr.f32.mxu0 0.0
    %1018 = vmatmul.mubr.f32.gmra.mxu0 %v756
    %v1019 = vpop.f32.mrf.mxu0
    %v1020 = vadd.f32 0.0, %v1019
    %v1021 = vpop.f32.mrf.mxu0
    %1022 = vmatprep.mubr.f32.mxu0 0.0
    %1023 = vmatmul.mubr.f32.gmra.mxu0 %v759
    %v1024 = vpop.f32.mrf.mxu0
    %v1025 = vadd.f32 0.0, %v1024
    %v1026 = vpop.f32.mrf.mxu0
    %1027 = vmatprep.mubr.f32.mxu0 0.0
    %1028 = vmatmul.mubr.f32.gmra.mxu0 %v762
    %v1029 = vpop.f32.mrf.mxu0
    %v1030 = vadd.f32 0.0, %v1029
    %v1031 = vpop.f32.mrf.mxu0
    %1032 = vmatprep.mubr.f32.mxu0 0.0
    %1033 = vmatmul.mubr.f32.gmra.mxu0 %v765
    %v1034 = vpop.f32.mrf.mxu0
    %v1035 = vadd.f32 0.0, %v1034
    %v1036 = vpop.f32.mrf.mxu0
    %1037 = vmatprep.mubr.f32.mxu0 0.0
    %1038 = vmatmul.mubr.f32.gmra.mxu0 %v768
    %v1039 = vpop.f32.mrf.mxu0
    %v1040 = vadd.f32 0.0, %v1039
    %v1041 = vpop.f32.mrf.mxu0
    %1042 = vmatprep.mubr.f32.mxu0 0.0
    %1043 = vmatmul.mubr.f32.gmra.mxu0 %v771
    %v1044 = vpop.f32.mrf.mxu0
    %v1045 = vadd.f32 0.0, %v1044
    %v1046 = vpop.f32.mrf.mxu0
    %1047 = vmatprep.mubr.f32.mxu0 0.0
    %1048 = vmatmul.mubr.f32.gmra.mxu0 %v774
    %v1049 = vpop.f32.mrf.mxu0
    %v1050 = vadd.f32 0.0, %v1049
    %v1051 = vpop.f32.mrf.mxu0
    %1052 = vmatprep.mubr.f32.mxu0 0.0
    %1053 = vmatmul.mubr.f32.gmra.mxu0 %v777
    %v1054 = vpop.f32.mrf.mxu0
    %v1055 = vadd.f32 0.0, %v1054
    %v1056 = vpop.f32.mrf.mxu0
    %1057 = vmatprep.mubr.f32.mxu0 0.0
    %1058 = vmatmul.mubr.f32.gmra.mxu0 %v780
    %v1059 = vpop.f32.mrf.mxu0
    %v1060 = vadd.f32 0.0, %v1059
    %v1061 = vpop.f32.mrf.mxu0
    %1062 = vmatprep.mubr.f32.mxu0 0.0
    %1063 = vmatmul.mubr.f32.gmra.mxu0 %v783
    %v1064 = vpop.f32.mrf.mxu0
    %v1065 = vadd.f32 0.0, %v1064
    %v1066 = vpop.f32.mrf.mxu0
    %1067 = vmatprep.mubr.f32.mxu0 0.0
    %1068 = vmatmul.mubr.f32.gmra.mxu0 %v786
    %v1069 = vpop.f32.mrf.mxu0
    %v1070 = vadd.f32 0.0, %v1069
    %v1071 = vpop.f32.mrf.mxu0
    %1072 = vmatprep.mubr.f32.mxu0 0.0
    %1073 = vmatmul.mubr.f32.gmra.mxu0 %v789
    %v1074 = vpop.f32.mrf.mxu0
    %v1075 = vadd.f32 0.0, %v1074
    %v1076 = vpop.f32.mrf.mxu0
    %1077 = vmatprep.mubr.f32.mxu0 0.0
    %1078 = vmatmul.mubr.f32.gmra.mxu0 %v792
    %v1079 = vpop.f32.mrf.mxu0
    %v1080 = vadd.f32 0.0, %v1079
    %v1081 = vpop.f32.mrf.mxu0
    %1082 = vmatprep.mubr.f32.mxu0 0.0
    %1083 = vmatmul.mubr.f32.gmra.mxu0 %v795
    %v1084 = vpop.f32.mrf.mxu0
    %v1085 = vadd.f32 0.0, %v1084
    %v1086 = vpop.f32.mrf.mxu0
    %1087 = vmatprep.mubr.f32.mxu0 0.0
    %1088 = vmatmul.mubr.f32.gmra.mxu0 %v798
    %v1089 = vpop.f32.mrf.mxu0
    %v1090 = vadd.f32 0.0, %v1089
    %v1091 = vpop.f32.mrf.mxu0
    %1092 = vmatprep.mubr.f32.mxu0 0.0
    %1093 = vmatmul.mubr.f32.gmra.mxu0 %v801
    %v1094 = vpop.f32.mrf.mxu0
    %v1095 = vadd.f32 0.0, %v1094
    %v1096 = vpop.f32.mrf.mxu0
    %1097 = vmatprep.mubr.f32.mxu0 0.0
    %1098 = vmatmul.mubr.f32.gmra.mxu0 %v804
    %v1099 = vpop.f32.mrf.mxu0
    %v1100 = vadd.f32 0.0, %v1099
    %v1101 = vpop.f32.mrf.mxu0
    %1102 = vmatprep.mubr.f32.mxu0 0.0
    %1103 = vmatmul.mubr.f32.gmra.mxu0 %v807
    %v1104 = vpop.f32.mrf.mxu0
    %v1105 = vadd.f32 0.0, %v1104
    %v1106 = vpop.f32.mrf.mxu0
    %1107 = vmatprep.mubr.f32.mxu0 0.0
    %1108 = vmatmul.mubr.f32.gmra.mxu0 %v810
    %v1109 = vpop.f32.mrf.mxu0
    %v1110 = vadd.f32 0.0, %v1109
    %v1111 = vpop.f32.mrf.mxu0
    %1112 = vmatprep.mubr.f32.mxu0 0.0
    %1113 = vmatmul.mubr.f32.gmra.mxu0 %v813
    %v1114 = vpop.f32.mrf.mxu0
    %v1115 = vadd.f32 0.0, %v1114
    %v1116 = vpop.f32.mrf.mxu0
    %1117 = vmatprep.mubr.f32.mxu0 0.0
    %1118 = vmatmul.mubr.f32.gmra.mxu0 %v816
    %v1119 = vpop.f32.mrf.mxu0
    %v1120 = vadd.f32 0.0, %v1119
    %v1121 = vpop.f32.mrf.mxu0
    %1122 = vmatprep.mubr.f32.mxu0 0.0
    %1123 = vmatmul.mubr.f32.gmra.mxu0 %v819
    %v1124 = vpop.f32.mrf.mxu0
    %v1125 = vadd.f32 0.0, %v1124
    %v1126 = vpop.f32.mrf.mxu0
    %1127 = vmatprep.mubr.f32.mxu0 0.0
    %1128 = vmatmul.mubr.f32.gmra.mxu0 %v822
    %v1129 = vpop.f32.mrf.mxu0
    %v1130 = vadd.f32 0.0, %v1129
    %v1131 = vpop.f32.mrf.mxu0
    %1132 = vmatprep.mubr.f32.mxu0 0.0
    %1133 = vmatmul.mubr.f32.gmra.mxu0 %v825
    %v1134 = vpop.f32.mrf.mxu0
    %v1135 = vadd.f32 0.0, %v1134
    %v1136 = vpop.f32.mrf.mxu0
    %1137 = vmatprep.mubr.f32.mxu0 0.0
    %1138 = vmatmul.mubr.f32.gmra.mxu0 %v828
    %v1139 = vpop.f32.mrf.mxu0
    %v1140 = vadd.f32 0.0, %v1139
    %v1141 = vpop.f32.mrf.mxu0
    %1142 = vmatprep.mubr.f32.mxu0 0.0
    %1143 = vmatmul.mubr.f32.gmra.mxu0 %v831
    %v1144 = vpop.f32.mrf.mxu0
    %v1145 = vadd.f32 0.0, %v1144
    %v1146 = vpop.f32.mrf.mxu0
    %1147 = vmatprep.mubr.f32.mxu0 0.0
    %1148 = vmatmul.mubr.f32.gmra.mxu0 %v834
    %v1149 = vpop.f32.mrf.mxu0
    %v1150 = vadd.f32 0.0, %v1149
    %v1151 = vpop.f32.mrf.mxu0
    %1152 = vmatprep.mubr.f32.mxu0 0.0
    %1153 = vmatmul.mubr.f32.gmra.mxu0 %v837
    %v1154 = vpop.f32.mrf.mxu0
    %v1155 = vadd.f32 0.0, %v1154
    %v1156 = vpop.f32.mrf.mxu0
    %1157 = vmatprep.mubr.f32.mxu0 0.0
    %1158 = vmatmul.mubr.f32.gmra.mxu0 %v840
    %v1159 = vpop.f32.mrf.mxu0
    %v1160 = vadd.f32 0.0, %v1159
    %v1161 = vpop.f32.mrf.mxu0
    %1162 = vmatprep.mubr.f32.mxu0 0.0
    %1163 = vmatmul.mubr.f32.gmra.mxu0 %v843
    %v1164 = vpop.f32.mrf.mxu0
    %v1165 = vadd.f32 0.0, %v1164
    %v1166 = vpop.f32.mrf.mxu0
    %1167 = vmatprep.mubr.f32.mxu0 0.0
    %1168 = vmatmul.mubr.f32.gmra.mxu0 %v846
    %v1169 = vpop.f32.mrf.mxu0
    %v1170 = vadd.f32 0.0, %v1169
    %v1171 = vpop.f32.mrf.mxu0
    %1172 = vmatprep.mubr.f32.mxu0 0.0
    %1173 = vmatmul.mubr.f32.gmra.mxu0 %v849
    %v1174 = vpop.f32.mrf.mxu0
    %v1175 = vadd.f32 0.0, %v1174
    %v1176 = vpop.f32.mrf.mxu0
    %1177 = vmatprep.mubr.f32.mxu0 0.0
    %1178 = vmatmul.mubr.f32.gmra.mxu0 %v852
    %v1179 = vpop.f32.mrf.mxu0
    %v1180 = vadd.f32 0.0, %v1179
    %v1181 = vpop.f32.mrf.mxu0
    %1182 = vmatprep.mubr.f32.mxu0 0.0
    %1183 = vmatmul.mubr.f32.gmra.mxu0 %v855
    %v1184 = vpop.f32.mrf.mxu0
    %v1185 = vadd.f32 0.0, %v1184
    %v1186 = vpop.f32.mrf.mxu0
    %1187 = vmatprep.mubr.f32.mxu0 0.0
    %1188 = vmatmul.mubr.f32.gmra.mxu0 %v858
    %v1189 = vpop.f32.mrf.mxu0
    %v1190 = vadd.f32 0.0, %v1189
    %v1191 = vpop.f32.mrf.mxu0
    %1192 = vmatprep.mubr.f32.mxu0 0.0
    %1193 = vmatmul.mubr.f32.gmra.mxu0 %v861
    %v1194 = vpop.f32.mrf.mxu0
    %v1195 = vadd.f32 0.0, %v1194
    %v1196 = vpop.f32.mrf.mxu0
    %1197 = vmatprep.mubr.f32.mxu0 0.0
    %1198 = vmatmul.mubr.f32.gmra.mxu0 %v864
    %v1199 = vpop.f32.mrf.mxu0
    %v1200 = vadd.f32 0.0, %v1199
    %v1201 = vpop.f32.mrf.mxu0
    %1202 = vmatprep.mubr.f32.mxu0 0.0
    %1203 = vmatmul.mubr.f32.gmra.mxu0 %v867
    %v1204 = vpop.f32.mrf.mxu0
    %v1205 = vadd.f32 0.0, %v1204
    %v1206 = vpop.f32.mrf.mxu0
    %1207 = vmatprep.mubr.f32.mxu0 0.0
    %1208 = vmatmul.mubr.f32.gmra.mxu0 %v870
    %v1209 = vpop.f32.mrf.mxu0
    %v1210 = vadd.f32 0.0, %v1209
    %v1211 = vpop.f32.mrf.mxu0
    %1212 = vmatprep.mubr.f32.mxu0 0.0
    %1213 = vmatmul.mubr.f32.gmra.mxu0 %v873
    %v1214 = vpop.f32.mrf.mxu0
    %v1215 = vadd.f32 0.0, %v1214
    %v1216 = vpop.f32.mrf.mxu0
    %1217 = vmatprep.mubr.f32.mxu0 0.0
    %1218 = vmatmul.mubr.f32.gmra.mxu0 %v876
    %v1219 = vpop.f32.mrf.mxu0
    %v1220 = vadd.f32 0.0, %v1219
    %v1221 = vpop.f32.mrf.mxu0
    %1222 = vmatprep.mubr.f32.mxu0 0.0
    %1223 = vmatmul.mubr.f32.gmra.mxu0 %v879
    %v1224 = vpop.f32.mrf.mxu0
    %v1225 = vadd.f32 0.0, %v1224
    %v1226 = vpop.f32.mrf.mxu0
    %1227 = vmatprep.mubr.f32.mxu0 0.0
    %1228 = vmatmul.mubr.f32.gmra.mxu0 %v882
    %v1229 = vpop.f32.mrf.mxu0
    %v1230 = vadd.f32 0.0, %v1229
    %v1231 = vpop.f32.mrf.mxu0
    %1232 = vmatprep.mubr.f32.mxu0 0.0
    %1233 = vmatmul.mubr.f32.gmra.mxu0 %v885
    %v1234 = vpop.f32.mrf.mxu0
    %v1235 = vadd.f32 0.0, %v1234
    %v1236 = vpop.f32.mrf.mxu0
    %1237 = vmatprep.mubr.f32.mxu0 0.0
    %1238 = vmatmul.mubr.f32.gmra.mxu0 %v888
    %v1239 = vpop.f32.mrf.mxu0
    %v1240 = vadd.f32 0.0, %v1239
    %v1241 = vpop.f32.mrf.mxu0
    %1242 = vmatprep.mubr.f32.mxu0 0.0
    %1243 = vmatmul.mubr.f32.gmra.mxu0 %v891
    %v1244 = vpop.f32.mrf.mxu0
    %v1245 = vadd.f32 0.0, %v1244
    %v1246 = vpop.f32.mrf.mxu0
    %1247 = vmatprep.mubr.f32.mxu0 0.0
    %1248 = vmatmul.mubr.f32.gmra.mxu0 %v894
    %v1249 = vpop.f32.mrf.mxu0
    %v1250 = vadd.f32 0.0, %v1249
    %v1251 = vpop.f32.mrf.mxu0
    %1252 = vmatprep.mubr.f32.mxu0 0.0
    %1253 = vmatmul.mubr.f32.gmra.mxu0 %v897
    %v1254 = vpop.f32.mrf.mxu0
    %v1255 = vadd.f32 0.0, %v1254
    %v1256 = vpop.f32.mrf.mxu0
    %1257 = vmatprep.mubr.f32.mxu0 0.0
    %1258 = vmatmul.mubr.f32.gmra.mxu0 %v900
    %v1259 = vpop.f32.mrf.mxu0
    %v1260 = vadd.f32 0.0, %v1259
    %v1261 = vpop.f32.mrf.mxu0
    %1262 = vmatprep.mubr.f32.mxu0 0.0
    %1263 = vmatmul.mubr.f32.gmra.mxu0 %v903
    %v1264 = vpop.f32.mrf.mxu0
    %v1265 = vadd.f32 0.0, %v1264
    %v1266 = vpop.f32.mrf.mxu0
    %1267 = vmatprep.mubr.f32.mxu0 0.0
    %1268 = vmatmul.mubr.f32.gmra.mxu0 %v906
    %v1269 = vpop.f32.mrf.mxu0
    %v1270 = vadd.f32 0.0, %v1269
    %v1271 = vpop.f32.mrf.mxu0
    %1272 = vmatprep.mubr.f32.mxu0 0.0
    %1273 = vmatmul.mubr.f32.gmra.mxu0 %v909
    %v1274 = vpop.f32.mrf.mxu0
    %v1275 = vadd.f32 0.0, %v1274
    %v1276 = vpop.f32.mrf.mxu0
    %1277 = vmatprep.mubr.f32.mxu0 0.0
    %1278 = vmatmul.mubr.f32.gmra.mxu0 %v912
    %v1279 = vpop.f32.mrf.mxu0
    %v1280 = vadd.f32 0.0, %v1279
    %v1281 = vpop.f32.mrf.mxu0
    %1282 = vmatprep.mubr.f32.mxu0 0.0
    %1283 = vmatmul.mubr.f32.gmra.mxu0 %v915
    %v1284 = vpop.f32.mrf.mxu0
    %v1285 = vadd.f32 0.0, %v1284
    %v1286 = vpop.f32.mrf.mxu0
    %1287 = vmatprep.mubr.f32.mxu0 0.0
    %1288 = vmatmul.mubr.f32.gmra.mxu0 %v918
    %v1289 = vpop.f32.mrf.mxu0
    %v1290 = vadd.f32 0.0, %v1289
    %v1291 = vpop.f32.mrf.mxu0
    %1292 = vmatprep.mubr.f32.mxu0 0.0
    %1293 = vmatmul.mubr.f32.gmra.mxu0 %v921
    %v1294 = vpop.f32.mrf.mxu0
    %v1295 = vadd.f32 0.0, %v1294
    %v1296 = vpop.f32.mrf.mxu0
    %1297 = vmatprep.mubr.f32.mxu0 0.0
    %1298 = vmatmul.mubr.f32.gmra.mxu0 %v924
    %v1299 = vpop.f32.mrf.mxu0
    %v1300 = vadd.f32 0.0, %v1299
    %v1301 = vpop.f32.mrf.mxu0
    %1302 = vmatprep.mubr.f32.mxu0 0.0
    %1303 = vmatmul.mubr.f32.gmra.mxu0 %v927
    %v1304 = vpop.f32.mrf.mxu0
    %v1305 = vadd.f32 0.0, %v1304
    %v1306 = vpop.f32.mrf.mxu0
    %1307 = vmatprep.mubr.f32.mxu0 0.0
    %1308 = vmatmul.mubr.f32.gmra.mxu0 %v930
    %v1309 = vpop.f32.mrf.mxu0
    %v1310 = vadd.f32 0.0, %v1309
    %v1311 = vpop.f32.mrf.mxu0
    %1312 = vmatprep.mubr.f32.mxu0 0.0
    %1313 = vmatmul.mubr.f32.gmra.mxu0 %v933
    %v1314 = vpop.f32.mrf.mxu0
    %v1315 = vadd.f32 0.0, %v1314
    %v1316 = vpop.f32.mrf.mxu0
    %1317 = vmatprep.mubr.f32.mxu0 0.0
    %1318 = vmatmul.mubr.f32.gmra.mxu0 %v936
    %v1319 = vpop.f32.mrf.mxu0
    %v1320 = vadd.f32 0.0, %v1319
    %v1321 = vpop.f32.mrf.mxu0
    %1322 = vdwg.mxu0
    %v1323 = vmax.f32 %v1005, 0.0
    %v1324 = vmax.f32 %v1010, 0.0
    %v1325 = vmax.f32 %v1015, 0.0
    %v1326 = vmax.f32 %v1020, 0.0
    %v1327 = vmax.f32 %v1025, 0.0
    %v1328 = vmax.f32 %v1030, 0.0
    %v1329 = vmax.f32 %v1035, 0.0
    %v1330 = vmax.f32 %v1040, 0.0
    %v1331 = vmax.f32 %v1045, 0.0
    %v1332 = vmax.f32 %v1050, 0.0
    %v1333 = vmax.f32 %v1055, 0.0
    %v1334 = vmax.f32 %v1060, 0.0
    %v1335 = vmax.f32 %v1065, 0.0
    %v1336 = vmax.f32 %v1070, 0.0
    %v1337 = vmax.f32 %v1075, 0.0
    %v1338 = vmax.f32 %v1080, 0.0
    %v1339 = vmax.f32 %v1085, 0.0
    %v1340 = vmax.f32 %v1090, 0.0
    %v1341 = vmax.f32 %v1095, 0.0
    %v1342 = vmax.f32 %v1100, 0.0
    %v1343 = vmax.f32 %v1105, 0.0
    %v1344 = vmax.f32 %v1110, 0.0
    %v1345 = vmax.f32 %v1115, 0.0
    %v1346 = vmax.f32 %v1120, 0.0
    %v1347 = vmax.f32 %v1125, 0.0
    %v1348 = vmax.f32 %v1130, 0.0
    %v1349 = vmax.f32 %v1135, 0.0
    %v1350 = vmax.f32 %v1140, 0.0
    %v1351 = vmax.f32 %v1145, 0.0
    %v1352 = vmax.f32 %v1150, 0.0
    %v1353 = vmax.f32 %v1155, 0.0
    %v1354 = vmax.f32 %v1160, 0.0
    %v1355 = vmax.f32 %v1165, 0.0
    %v1356 = vmax.f32 %v1170, 0.0
    %v1357 = vmax.f32 %v1175, 0.0
    %v1358 = vmax.f32 %v1180, 0.0
    %v1359 = vmax.f32 %v1185, 0.0
    %v1360 = vmax.f32 %v1190, 0.0
    %v1361 = vmax.f32 %v1195, 0.0
    %v1362 = vmax.f32 %v1200, 0.0
    %v1363 = vmax.f32 %v1205, 0.0
    %v1364 = vmax.f32 %v1210, 0.0
    %v1365 = vmax.f32 %v1215, 0.0
    %v1366 = vmax.f32 %v1220, 0.0
    %v1367 = vmax.f32 %v1225, 0.0
    %v1368 = vmax.f32 %v1230, 0.0
    %v1369 = vmax.f32 %v1235, 0.0
    %v1370 = vmax.f32 %v1240, 0.0
    %v1371 = vmax.f32 %v1245, 0.0
    %v1372 = vmax.f32 %v1250, 0.0
    %v1373 = vmax.f32 %v1255, 0.0
    %v1374 = vmax.f32 %v1260, 0.0
    %v1375 = vmax.f32 %v1265, 0.0
    %v1376 = vmax.f32 %v1270, 0.0
    %v1377 = vmax.f32 %v1275, 0.0
    %v1378 = vmax.f32 %v1280, 0.0
    %v1379 = vmax.f32 %v1285, 0.0
    %v1380 = vmax.f32 %v1290, 0.0
    %v1381 = vmax.f32 %v1295, 0.0
    %v1382 = vmax.f32 %v1300, 0.0
    %v1383 = vmax.f32 %v1305, 0.0
    %v1384 = vmax.f32 %v1310, 0.0
    %v1385 = vmax.f32 %v1315, 0.0
    %v1386 = vmax.f32 %v1320, 0.0
    %v1387 = vld [vmem:[%s3] sm:$0xff]
    %v1388 = vld [vmem:[%s3 + $0x8] sm:$0xff]
    %v1389 = vld [vmem:[%s3 + $0x10] sm:$0xff]
    %v1390 = vld [vmem:[%s3 + $0x18] sm:$0xff]
    %v1392 = vsel %vm745, %v1323, 0
    %v1395 = vsel %vm745, %v1324, 0
    %v1398 = vsel %vm745, %v1325, 0
    %v1401 = vsel %vm745, %v1326, 0
    %v1404 = vsel %vm745, %v1327, 0
    %v1407 = vsel %vm745, %v1328, 0
    %v1410 = vsel %vm745, %v1329, 0
    %v1413 = vsel %vm745, %v1330, 0
    %v1416 = vsel %vm745, %v1331, 0
    %v1419 = vsel %vm745, %v1332, 0
    %v1422 = vsel %vm745, %v1333, 0
    %v1425 = vsel %vm745, %v1334, 0
    %v1428 = vsel %vm745, %v1335, 0
    %v1431 = vsel %vm745, %v1336, 0
    %v1434 = vsel %vm745, %v1337, 0
    %v1437 = vsel %vm745, %v1338, 0
    %v1440 = vsel %vm745, %v1339, 0
    %v1443 = vsel %vm745, %v1340, 0
    %v1446 = vsel %vm745, %v1341, 0
    %v1449 = vsel %vm745, %v1342, 0
    %v1452 = vsel %vm745, %v1343, 0
    %v1455 = vsel %vm745, %v1344, 0
    %v1458 = vsel %vm745, %v1345, 0
    %v1461 = vsel %vm745, %v1346, 0
    %v1464 = vsel %vm745, %v1347, 0
    %v1467 = vsel %vm745, %v1348, 0
    %v1470 = vsel %vm745, %v1349, 0
    %v1473 = vsel %vm745, %v1350, 0
    %v1476 = vsel %vm745, %v1351, 0
    %v1479 = vsel %vm745, %v1352, 0
    %v1482 = vsel %vm745, %v1353, 0
    %v1485 = vsel %vm745, %v1354, 0
    %v1488 = vsel %vm745, %v1355, 0
    %v1491 = vsel %vm745, %v1356, 0
    %v1494 = vsel %vm745, %v1357, 0
    %v1497 = vsel %vm745, %v1358, 0
    %v1500 = vsel %vm745, %v1359, 0
    %v1503 = vsel %vm745, %v1360, 0
    %v1506 = vsel %vm745, %v1361, 0
    %v1509 = vsel %vm745, %v1362, 0
    %v1512 = vsel %vm745, %v1363, 0
    %v1515 = vsel %vm745, %v1364, 0
    %v1518 = vsel %vm745, %v1365, 0
    %v1521 = vsel %vm745, %v1366, 0
    %v1524 = vsel %vm745, %v1367, 0
    %v1527 = vsel %vm745, %v1368, 0
    %v1530 = vsel %vm745, %v1369, 0
    %v1533 = vsel %vm745, %v1370, 0
    %v1536 = vsel %vm745, %v1371, 0
    %v1539 = vsel %vm745, %v1372, 0
    %v1542 = vsel %vm745, %v1373, 0
    %v1545 = vsel %vm745, %v1374, 0
    %v1548 = vsel %vm745, %v1375, 0
    %v1551 = vsel %vm745, %v1376, 0
    %v1554 = vsel %vm745, %v1377, 0
    %v1557 = vsel %vm745, %v1378, 0
    %v1560 = vsel %vm745, %v1379, 0
    %v1563 = vsel %vm745, %v1380, 0
    %v1566 = vsel %vm745, %v1381, 0
    %v1569 = vsel %vm745, %v1382, 0
    %v1572 = vsel %vm745, %v1383, 0
    %v1575 = vsel %vm745, %v1384, 0
    %v1578 = vsel %vm745, %v1385, 0
    %v1581 = vsel %vm745, %v1386, 0
    %1583 = vmatprep.subr.mxu0 0.0
    %1584 = vmatpush1.msra.mxu0 0.0
    %1585 = vmatprep.subr.mxu0 0.0
    %1586 = vmatpush1.msra.mxu0 0.0
    %1587 = vmatprep.subr.mxu0 0.0
    %1588 = vmatpush1.msra.mxu0 0.0
    %1589 = vmatprep.subr.mxu0 0.0
    %1590 = vmatpush1.msra.mxu0 0.0
    %1591 = vmatprep.subr.mxu0 0.0
    %1592 = vmatpush1.msra.mxu0 0.0
    %1593 = vmatprep.subr.mxu0 0.0
    %1594 = vmatpush1.msra.mxu0 0.0
    %1595 = vmatprep.subr.mxu0 0.0
    %1596 = vmatpush1.msra.mxu0 0.0
    %1597 = vmatprep.subr.mxu0 0.0
    %1598 = vmatpush1.msra.mxu0 0.0
    %1599 = vmatprep.subr.mxu0 0.0
    %1600 = vmatpush1.msra.mxu0 0.0
    %1601 = vmatprep.subr.mxu0 0.0
    %1602 = vmatpush1.msra.mxu0 0.0
    %1603 = vmatprep.subr.mxu0 0.0
    %1604 = vmatpush1.msra.mxu0 0.0
    %1605 = vmatprep.subr.mxu0 0.0
    %1606 = vmatpush1.msra.mxu0 0.0
    %1607 = vmatprep.subr.mxu0 0.0
    %1608 = vmatpush1.msra.mxu0 %v1390
    %1609 = vmatprep.subr.mxu0 0.0
    %1610 = vmatpush1.msra.mxu0 %v1389
    %1611 = vmatprep.subr.mxu0 0.0
    %1612 = vmatpush1.msra.mxu0 %v1388
    %1613 = vmatprep.subr.mxu0 0.0
    %1614 = vmatpush1.msra.mxu0 %v1387
    %1615 = vmatprep.subr.mxu0 0.0
    %1616 = vmatpush2.msra.mxu0 0.0
    %1617 = vmatprep.subr.mxu0 0.0
    %1618 = vmatpush2.msra.mxu0 0.0
    %1619 = vmatprep.subr.mxu0 0.0
    %1620 = vmatpush2.msra.mxu0 0.0
    %1621 = vmatprep.subr.mxu0 0.0
    %1622 = vmatpush2.msra.mxu0 0.0
    %1623 = vmatprep.subr.mxu0 0.0
    %1624 = vmatpush2.msra.mxu0 0.0
    %1625 = vmatprep.subr.mxu0 0.0
    %1626 = vmatpush2.msra.mxu0 0.0
    %1627 = vmatprep.subr.mxu0 0.0
    %1628 = vmatpush2.msra.mxu0 0.0
    %1629 = vmatprep.subr.mxu0 0.0
    %1630 = vmatpush2.msra.mxu0 0.0
    %1631 = vmatprep.subr.mxu0 0.0
    %1632 = vmatpush2.msra.mxu0 0.0
    %1633 = vmatprep.subr.mxu0 0.0
    %1634 = vmatpush2.msra.mxu0 0.0
    %1635 = vmatprep.subr.mxu0 0.0
    %1636 = vmatpush2.msra.mxu0 0.0
    %1637 = vmatprep.subr.mxu0 0.0
    %1638 = vmatpush2.msra.mxu0 0.0
    %1639 = vmatprep.subr.mxu0 0.0
    %1640 = vmatpush2.msra.mxu0 0.0
    %1641 = vmatprep.subr.mxu0 0.0
    %1642 = vmatpush2.msra.mxu0 0.0
    %1643 = vmatprep.subr.mxu0 0.0
    %1644 = vmatpush2.msra.mxu0 0.0
    %1645 = vmatprep.subr.mxu0 0.0
    %1646 = vmatpush2.msra.mxu0 0.0
    %1647 = vmatprep.mubr.f32.mxu0 0.0
    %1648 = vmatmul.mubr.f32.gmra.mxu0 %v1392
    %v1649 = vpop.f32.mrf.mxu0
    %v1650 = vadd.f32 0.0, %v1649
    %v1651 = vpop.f32.mrf.mxu0
    %1652 = vmatprep.mubr.f32.mxu0 0.0
    %1653 = vmatmul.mubr.f32.gmra.mxu0 %v1395
    %v1654 = vpop.f32.mrf.mxu0
    %v1655 = vadd.f32 0.0, %v1654
    %v1656 = vpop.f32.mrf.mxu0
    %1657 = vmatprep.mubr.f32.mxu0 0.0
    %1658 = vmatmul.mubr.f32.gmra.mxu0 %v1398
    %v1659 = vpop.f32.mrf.mxu0
    %v1660 = vadd.f32 0.0, %v1659
    %v1661 = vpop.f32.mrf.mxu0
    %1662 = vmatprep.mubr.f32.mxu0 0.0
    %1663 = vmatmul.mubr.f32.gmra.mxu0 %v1401
    %v1664 = vpop.f32.mrf.mxu0
    %v1665 = vadd.f32 0.0, %v1664
    %v1666 = vpop.f32.mrf.mxu0
    %1667 = vmatprep.mubr.f32.mxu0 0.0
    %1668 = vmatmul.mubr.f32.gmra.mxu0 %v1404
    %v1669 = vpop.f32.mrf.mxu0
    %v1670 = vadd.f32 0.0, %v1669
    %v1671 = vpop.f32.mrf.mxu0
    %1672 = vmatprep.mubr.f32.mxu0 0.0
    %1673 = vmatmul.mubr.f32.gmra.mxu0 %v1407
    %v1674 = vpop.f32.mrf.mxu0
    %v1675 = vadd.f32 0.0, %v1674
    %v1676 = vpop.f32.mrf.mxu0
    %1677 = vmatprep.mubr.f32.mxu0 0.0
    %1678 = vmatmul.mubr.f32.gmra.mxu0 %v1410
    %v1679 = vpop.f32.mrf.mxu0
    %v1680 = vadd.f32 0.0, %v1679
    %v1681 = vpop.f32.mrf.mxu0
    %1682 = vmatprep.mubr.f32.mxu0 0.0
    %1683 = vmatmul.mubr.f32.gmra.mxu0 %v1413
    %v1684 = vpop.f32.mrf.mxu0
    %v1685 = vadd.f32 0.0, %v1684
    %v1686 = vpop.f32.mrf.mxu0
    %1687 = vmatprep.mubr.f32.mxu0 0.0
    %1688 = vmatmul.mubr.f32.gmra.mxu0 %v1416
    %v1689 = vpop.f32.mrf.mxu0
    %v1690 = vadd.f32 0.0, %v1689
    %v1691 = vpop.f32.mrf.mxu0
    %1692 = vmatprep.mubr.f32.mxu0 0.0
    %1693 = vmatmul.mubr.f32.gmra.mxu0 %v1419
    %v1694 = vpop.f32.mrf.mxu0
    %v1695 = vadd.f32 0.0, %v1694
    %v1696 = vpop.f32.mrf.mxu0
    %1697 = vmatprep.mubr.f32.mxu0 0.0
    %1698 = vmatmul.mubr.f32.gmra.mxu0 %v1422
    %v1699 = vpop.f32.mrf.mxu0
    %v1700 = vadd.f32 0.0, %v1699
    %v1701 = vpop.f32.mrf.mxu0
    %1702 = vmatprep.mubr.f32.mxu0 0.0
    %1703 = vmatmul.mubr.f32.gmra.mxu0 %v1425
    %v1704 = vpop.f32.mrf.mxu0
    %v1705 = vadd.f32 0.0, %v1704
    %v1706 = vpop.f32.mrf.mxu0
    %1707 = vmatprep.mubr.f32.mxu0 0.0
    %1708 = vmatmul.mubr.f32.gmra.mxu0 %v1428
    %v1709 = vpop.f32.mrf.mxu0
    %v1710 = vadd.f32 0.0, %v1709
    %v1711 = vpop.f32.mrf.mxu0
    %1712 = vmatprep.mubr.f32.mxu0 0.0
    %1713 = vmatmul.mubr.f32.gmra.mxu0 %v1431
    %v1714 = vpop.f32.mrf.mxu0
    %v1715 = vadd.f32 0.0, %v1714
    %v1716 = vpop.f32.mrf.mxu0
    %1717 = vmatprep.mubr.f32.mxu0 0.0
    %1718 = vmatmul.mubr.f32.gmra.mxu0 %v1434
    %v1719 = vpop.f32.mrf.mxu0
    %v1720 = vadd.f32 0.0, %v1719
    %v1721 = vpop.f32.mrf.mxu0
    %1722 = vmatprep.mubr.f32.mxu0 0.0
    %1723 = vmatmul.mubr.f32.gmra.mxu0 %v1437
    %v1724 = vpop.f32.mrf.mxu0
    %v1725 = vadd.f32 0.0, %v1724
    %v1726 = vpop.f32.mrf.mxu0
    %1727 = vmatprep.mubr.f32.mxu0 0.0
    %1728 = vmatmul.mubr.f32.gmra.mxu0 %v1440
    %v1729 = vpop.f32.mrf.mxu0
    %v1730 = vadd.f32 0.0, %v1729
    %v1731 = vpop.f32.mrf.mxu0
    %1732 = vmatprep.mubr.f32.mxu0 0.0
    %1733 = vmatmul.mubr.f32.gmra.mxu0 %v1443
    %v1734 = vpop.f32.mrf.mxu0
    %v1735 = vadd.f32 0.0, %v1734
    %v1736 = vpop.f32.mrf.mxu0
    %1737 = vmatprep.mubr.f32.mxu0 0.0
    %1738 = vmatmul.mubr.f32.gmra.mxu0 %v1446
    %v1739 = vpop.f32.mrf.mxu0
    %v1740 = vadd.f32 0.0, %v1739
    %v1741 = vpop.f32.mrf.mxu0
    %1742 = vmatprep.mubr.f32.mxu0 0.0
    %1743 = vmatmul.mubr.f32.gmra.mxu0 %v1449
    %v1744 = vpop.f32.mrf.mxu0
    %v1745 = vadd.f32 0.0, %v1744
    %v1746 = vpop.f32.mrf.mxu0
    %1747 = vmatprep.mubr.f32.mxu0 0.0
    %1748 = vmatmul.mubr.f32.gmra.mxu0 %v1452
    %v1749 = vpop.f32.mrf.mxu0
    %v1750 = vadd.f32 0.0, %v1749
    %v1751 = vpop.f32.mrf.mxu0
    %1752 = vmatprep.mubr.f32.mxu0 0.0
    %1753 = vmatmul.mubr.f32.gmra.mxu0 %v1455
    %v1754 = vpop.f32.mrf.mxu0
    %v1755 = vadd.f32 0.0, %v1754
    %v1756 = vpop.f32.mrf.mxu0
    %1757 = vmatprep.mubr.f32.mxu0 0.0
    %1758 = vmatmul.mubr.f32.gmra.mxu0 %v1458
    %v1759 = vpop.f32.mrf.mxu0
    %v1760 = vadd.f32 0.0, %v1759
    %v1761 = vpop.f32.mrf.mxu0
    %1762 = vmatprep.mubr.f32.mxu0 0.0
    %1763 = vmatmul.mubr.f32.gmra.mxu0 %v1461
    %v1764 = vpop.f32.mrf.mxu0
    %v1765 = vadd.f32 0.0, %v1764
    %v1766 = vpop.f32.mrf.mxu0
    %1767 = vmatprep.mubr.f32.mxu0 0.0
    %1768 = vmatmul.mubr.f32.gmra.mxu0 %v1464
    %v1769 = vpop.f32.mrf.mxu0
    %v1770 = vadd.f32 0.0, %v1769
    %v1771 = vpop.f32.mrf.mxu0
    %1772 = vmatprep.mubr.f32.mxu0 0.0
    %1773 = vmatmul.mubr.f32.gmra.mxu0 %v1467
    %v1774 = vpop.f32.mrf.mxu0
    %v1775 = vadd.f32 0.0, %v1774
    %v1776 = vpop.f32.mrf.mxu0
    %1777 = vmatprep.mubr.f32.mxu0 0.0
    %1778 = vmatmul.mubr.f32.gmra.mxu0 %v1470
    %v1779 = vpop.f32.mrf.mxu0
    %v1780 = vadd.f32 0.0, %v1779
    %v1781 = vpop.f32.mrf.mxu0
    %1782 = vmatprep.mubr.f32.mxu0 0.0
    %1783 = vmatmul.mubr.f32.gmra.mxu0 %v1473
    %v1784 = vpop.f32.mrf.mxu0
    %v1785 = vadd.f32 0.0, %v1784
    %v1786 = vpop.f32.mrf.mxu0
    %1787 = vmatprep.mubr.f32.mxu0 0.0
    %1788 = vmatmul.mubr.f32.gmra.mxu0 %v1476
    %v1789 = vpop.f32.mrf.mxu0
    %v1790 = vadd.f32 0.0, %v1789
    %v1791 = vpop.f32.mrf.mxu0
    %1792 = vmatprep.mubr.f32.mxu0 0.0
    %1793 = vmatmul.mubr.f32.gmra.mxu0 %v1479
    %v1794 = vpop.f32.mrf.mxu0
    %v1795 = vadd.f32 0.0, %v1794
    %v1796 = vpop.f32.mrf.mxu0
    %1797 = vmatprep.mubr.f32.mxu0 0.0
    %1798 = vmatmul.mubr.f32.gmra.mxu0 %v1482
    %v1799 = vpop.f32.mrf.mxu0
    %v1800 = vadd.f32 0.0, %v1799
    %v1801 = vpop.f32.mrf.mxu0
    %1802 = vmatprep.mubr.f32.mxu0 0.0
    %1803 = vmatmul.mubr.f32.gmra.mxu0 %v1485
    %v1804 = vpop.f32.mrf.mxu0
    %v1805 = vadd.f32 0.0, %v1804
    %v1806 = vpop.f32.mrf.mxu0
    %1807 = vmatprep.mubr.f32.mxu0 0.0
    %1808 = vmatmul.mubr.f32.gmra.mxu0 %v1488
    %v1809 = vpop.f32.mrf.mxu0
    %v1810 = vadd.f32 0.0, %v1809
    %v1811 = vpop.f32.mrf.mxu0
    %1812 = vmatprep.mubr.f32.mxu0 0.0
    %1813 = vmatmul.mubr.f32.gmra.mxu0 %v1491
    %v1814 = vpop.f32.mrf.mxu0
    %v1815 = vadd.f32 0.0, %v1814
    %v1816 = vpop.f32.mrf.mxu0
    %1817 = vmatprep.mubr.f32.mxu0 0.0
    %1818 = vmatmul.mubr.f32.gmra.mxu0 %v1494
    %v1819 = vpop.f32.mrf.mxu0
    %v1820 = vadd.f32 0.0, %v1819
    %v1821 = vpop.f32.mrf.mxu0
    %1822 = vmatprep.mubr.f32.mxu0 0.0
    %1823 = vmatmul.mubr.f32.gmra.mxu0 %v1497
    %v1824 = vpop.f32.mrf.mxu0
    %v1825 = vadd.f32 0.0, %v1824
    %v1826 = vpop.f32.mrf.mxu0
    %1827 = vmatprep.mubr.f32.mxu0 0.0
    %1828 = vmatmul.mubr.f32.gmra.mxu0 %v1500
    %v1829 = vpop.f32.mrf.mxu0
    %v1830 = vadd.f32 0.0, %v1829
    %v1831 = vpop.f32.mrf.mxu0
    %1832 = vmatprep.mubr.f32.mxu0 0.0
    %1833 = vmatmul.mubr.f32.gmra.mxu0 %v1503
    %v1834 = vpop.f32.mrf.mxu0
    %v1835 = vadd.f32 0.0, %v1834
    %v1836 = vpop.f32.mrf.mxu0
    %1837 = vmatprep.mubr.f32.mxu0 0.0
    %1838 = vmatmul.mubr.f32.gmra.mxu0 %v1506
    %v1839 = vpop.f32.mrf.mxu0
    %v1840 = vadd.f32 0.0, %v1839
    %v1841 = vpop.f32.mrf.mxu0
    %1842 = vmatprep.mubr.f32.mxu0 0.0
    %1843 = vmatmul.mubr.f32.gmra.mxu0 %v1509
    %v1844 = vpop.f32.mrf.mxu0
    %v1845 = vadd.f32 0.0, %v1844
    %v1846 = vpop.f32.mrf.mxu0
    %1847 = vmatprep.mubr.f32.mxu0 0.0
    %1848 = vmatmul.mubr.f32.gmra.mxu0 %v1512
    %v1849 = vpop.f32.mrf.mxu0
    %v1850 = vadd.f32 0.0, %v1849
    %v1851 = vpop.f32.mrf.mxu0
    %1852 = vmatprep.mubr.f32.mxu0 0.0
    %1853 = vmatmul.mubr.f32.gmra.mxu0 %v1515
    %v1854 = vpop.f32.mrf.mxu0
    %v1855 = vadd.f32 0.0, %v1854
    %v1856 = vpop.f32.mrf.mxu0
    %1857 = vmatprep.mubr.f32.mxu0 0.0
    %1858 = vmatmul.mubr.f32.gmra.mxu0 %v1518
    %v1859 = vpop.f32.mrf.mxu0
    %v1860 = vadd.f32 0.0, %v1859
    %v1861 = vpop.f32.mrf.mxu0
    %1862 = vmatprep.mubr.f32.mxu0 0.0
    %1863 = vmatmul.mubr.f32.gmra.mxu0 %v1521
    %v1864 = vpop.f32.mrf.mxu0
    %v1865 = vadd.f32 0.0, %v1864
    %v1866 = vpop.f32.mrf.mxu0
    %1867 = vmatprep.mubr.f32.mxu0 0.0
    %1868 = vmatmul.mubr.f32.gmra.mxu0 %v1524
    %v1869 = vpop.f32.mrf.mxu0
    %v1870 = vadd.f32 0.0, %v1869
    %v1871 = vpop.f32.mrf.mxu0
    %1872 = vmatprep.mubr.f32.mxu0 0.0
    %1873 = vmatmul.mubr.f32.gmra.mxu0 %v1527
    %v1874 = vpop.f32.mrf.mxu0
    %v1875 = vadd.f32 0.0, %v1874
    %v1876 = vpop.f32.mrf.mxu0
    %1877 = vmatprep.mubr.f32.mxu0 0.0
    %1878 = vmatmul.mubr.f32.gmra.mxu0 %v1530
    %v1879 = vpop.f32.mrf.mxu0
    %v1880 = vadd.f32 0.0, %v1879
    %v1881 = vpop.f32.mrf.mxu0
    %1882 = vmatprep.mubr.f32.mxu0 0.0
    %1883 = vmatmul.mubr.f32.gmra.mxu0 %v1533
    %v1884 = vpop.f32.mrf.mxu0
    %v1885 = vadd.f32 0.0, %v1884
    %v1886 = vpop.f32.mrf.mxu0
    %1887 = vmatprep.mubr.f32.mxu0 0.0
    %1888 = vmatmul.mubr.f32.gmra.mxu0 %v1536
    %v1889 = vpop.f32.mrf.mxu0
    %v1890 = vadd.f32 0.0, %v1889
    %v1891 = vpop.f32.mrf.mxu0
    %1892 = vmatprep.mubr.f32.mxu0 0.0
    %1893 = vmatmul.mubr.f32.gmra.mxu0 %v1539
    %v1894 = vpop.f32.mrf.mxu0
    %v1895 = vadd.f32 0.0, %v1894
    %v1896 = vpop.f32.mrf.mxu0
    %1897 = vmatprep.mubr.f32.mxu0 0.0
    %1898 = vmatmul.mubr.f32.gmra.mxu0 %v1542
    %v1899 = vpop.f32.mrf.mxu0
    %v1900 = vadd.f32 0.0, %v1899
    %v1901 = vpop.f32.mrf.mxu0
    %1902 = vmatprep.mubr.f32.mxu0 0.0
    %1903 = vmatmul.mubr.f32.gmra.mxu0 %v1545
    %v1904 = vpop.f32.mrf.mxu0
    %v1905 = vadd.f32 0.0, %v1904
    %v1906 = vpop.f32.mrf.mxu0
    %1907 = vmatprep.mubr.f32.mxu0 0.0
    %1908 = vmatmul.mubr.f32.gmra.mxu0 %v1548
    %v1909 = vpop.f32.mrf.mxu0
    %v1910 = vadd.f32 0.0, %v1909
    %v1911 = vpop.f32.mrf.mxu0
    %1912 = vmatprep.mubr.f32.mxu0 0.0
    %1913 = vmatmul.mubr.f32.gmra.mxu0 %v1551
    %v1914 = vpop.f32.mrf.mxu0
    %v1915 = vadd.f32 0.0, %v1914
    %v1916 = vpop.f32.mrf.mxu0
    %1917 = vmatprep.mubr.f32.mxu0 0.0
    %1918 = vmatmul.mubr.f32.gmra.mxu0 %v1554
    %v1919 = vpop.f32.mrf.mxu0
    %v1920 = vadd.f32 0.0, %v1919
    %v1921 = vpop.f32.mrf.mxu0
    %1922 = vmatprep.mubr.f32.mxu0 0.0
    %1923 = vmatmul.mubr.f32.gmra.mxu0 %v1557
    %v1924 = vpop.f32.mrf.mxu0
    %v1925 = vadd.f32 0.0, %v1924
    %v1926 = vpop.f32.mrf.mxu0
    %1927 = vmatprep.mubr.f32.mxu0 0.0
    %1928 = vmatmul.mubr.f32.gmra.mxu0 %v1560
    %v1929 = vpop.f32.mrf.mxu0
    %v1930 = vadd.f32 0.0, %v1929
    %v1931 = vpop.f32.mrf.mxu0
    %1932 = vmatprep.mubr.f32.mxu0 0.0
    %1933 = vmatmul.mubr.f32.gmra.mxu0 %v1563
    %v1934 = vpop.f32.mrf.mxu0
    %v1935 = vadd.f32 0.0, %v1934
    %v1936 = vpop.f32.mrf.mxu0
    %1937 = vmatprep.mubr.f32.mxu0 0.0
    %1938 = vmatmul.mubr.f32.gmra.mxu0 %v1566
    %v1939 = vpop.f32.mrf.mxu0
    %v1940 = vadd.f32 0.0, %v1939
    %v1941 = vpop.f32.mrf.mxu0
    %1942 = vmatprep.mubr.f32.mxu0 0.0
    %1943 = vmatmul.mubr.f32.gmra.mxu0 %v1569
    %v1944 = vpop.f32.mrf.mxu0
    %v1945 = vadd.f32 0.0, %v1944
    %v1946 = vpop.f32.mrf.mxu0
    %1947 = vmatprep.mubr.f32.mxu0 0.0
    %1948 = vmatmul.mubr.f32.gmra.mxu0 %v1572
    %v1949 = vpop.f32.mrf.mxu0
    %v1950 = vadd.f32 0.0, %v1949
    %v1951 = vpop.f32.mrf.mxu0
    %1952 = vmatprep.mubr.f32.mxu0 0.0
    %1953 = vmatmul.mubr.f32.gmra.mxu0 %v1575
    %v1954 = vpop.f32.mrf.mxu0
    %v1955 = vadd.f32 0.0, %v1954
    %v1956 = vpop.f32.mrf.mxu0
    %1957 = vmatprep.mubr.f32.mxu0 0.0
    %1958 = vmatmul.mubr.f32.gmra.mxu0 %v1578
    %v1959 = vpop.f32.mrf.mxu0
    %v1960 = vadd.f32 0.0, %v1959
    %v1961 = vpop.f32.mrf.mxu0
    %1962 = vmatprep.mubr.f32.mxu0 0.0
    %1963 = vmatmul.mubr.f32.gmra.mxu0 %v1581
    %v1964 = vpop.f32.mrf.mxu0
    %v1965 = vadd.f32 0.0, %v1964
    %v1966 = vpop.f32.mrf.mxu0
    %1967 = vdwg.mxu0
    %v1968 = vmax.f32 %v1650, 0.0
    %v1969 = vmax.f32 %v1655, 0.0
    %v1970 = vmax.f32 %v1660, 0.0
    %v1971 = vmax.f32 %v1665, 0.0
    %v1972 = vmax.f32 %v1670, 0.0
    %v1973 = vmax.f32 %v1675, 0.0
    %v1974 = vmax.f32 %v1680, 0.0
    %v1975 = vmax.f32 %v1685, 0.0
    %v1976 = vmax.f32 %v1690, 0.0
    %v1977 = vmax.f32 %v1695, 0.0
    %v1978 = vmax.f32 %v1700, 0.0
    %v1979 = vmax.f32 %v1705, 0.0
    %v1980 = vmax.f32 %v1710, 0.0
    %v1981 = vmax.f32 %v1715, 0.0
    %v1982 = vmax.f32 %v1720, 0.0
    %v1983 = vmax.f32 %v1725, 0.0
    %v1984 = vmax.f32 %v1730, 0.0
    %v1985 = vmax.f32 %v1735, 0.0
    %v1986 = vmax.f32 %v1740, 0.0
    %v1987 = vmax.f32 %v1745, 0.0
    %v1988 = vmax.f32 %v1750, 0.0
    %v1989 = vmax.f32 %v1755, 0.0
    %v1990 = vmax.f32 %v1760, 0.0
    %v1991 = vmax.f32 %v1765, 0.0
    %v1992 = vmax.f32 %v1770, 0.0
    %v1993 = vmax.f32 %v1775, 0.0
    %v1994 = vmax.f32 %v1780, 0.0
    %v1995 = vmax.f32 %v1785, 0.0
    %v1996 = vmax.f32 %v1790, 0.0
    %v1997 = vmax.f32 %v1795, 0.0
    %v1998 = vmax.f32 %v1800, 0.0
    %v1999 = vmax.f32 %v1805, 0.0
    %v2000 = vmax.f32 %v1810, 0.0
    %v2001 = vmax.f32 %v1815, 0.0
    %v2002 = vmax.f32 %v1820, 0.0
    %v2003 = vmax.f32 %v1825, 0.0
    %v2004 = vmax.f32 %v1830, 0.0
    %v2005 = vmax.f32 %v1835, 0.0
    %v2006 = vmax.f32 %v1840, 0.0
    %v2007 = vmax.f32 %v1845, 0.0
    %v2008 = vmax.f32 %v1850, 0.0
    %v2009 = vmax.f32 %v1855, 0.0
    %v2010 = vmax.f32 %v1860, 0.0
    %v2011 = vmax.f32 %v1865, 0.0
    %v2012 = vmax.f32 %v1870, 0.0
    %v2013 = vmax.f32 %v1875, 0.0
    %v2014 = vmax.f32 %v1880, 0.0
    %v2015 = vmax.f32 %v1885, 0.0
    %v2016 = vmax.f32 %v1890, 0.0
    %v2017 = vmax.f32 %v1895, 0.0
    %v2018 = vmax.f32 %v1900, 0.0
    %v2019 = vmax.f32 %v1905, 0.0
    %v2020 = vmax.f32 %v1910, 0.0
    %v2021 = vmax.f32 %v1915, 0.0
    %v2022 = vmax.f32 %v1920, 0.0
    %v2023 = vmax.f32 %v1925, 0.0
    %v2024 = vmax.f32 %v1930, 0.0
    %v2025 = vmax.f32 %v1935, 0.0
    %v2026 = vmax.f32 %v1940, 0.0
    %v2027 = vmax.f32 %v1945, 0.0
    %v2028 = vmax.f32 %v1950, 0.0
    %v2029 = vmax.f32 %v1955, 0.0
    %v2030 = vmax.f32 %v1960, 0.0
    %v2031 = vmax.f32 %v1965, 0.0
    %v2032 = vsel %vm745, %v1323, 0.0
    %v2033 = vsel %vm745, %v1324, 0.0
    %v2034 = vadd.f32 %v2032, %v2033
    %v2035 = vsel %vm745, %v1325, 0.0
    %v2036 = vadd.f32 %v2034, %v2035
    %v2037 = vsel %vm745, %v1326, 0.0
    %v2038 = vadd.f32 %v2036, %v2037
    %v2039 = vsel %vm745, %v1327, 0.0
    %v2040 = vadd.f32 %v2038, %v2039
    %v2041 = vsel %vm745, %v1328, 0.0
    %v2042 = vadd.f32 %v2040, %v2041
    %v2043 = vsel %vm745, %v1329, 0.0
    %v2044 = vadd.f32 %v2042, %v2043
    %v2045 = vsel %vm745, %v1330, 0.0
    %v2046 = vadd.f32 %v2044, %v2045
    %v2047 = vsel %vm745, %v1331, 0.0
    %v2048 = vadd.f32 %v2046, %v2047
    %v2049 = vsel %vm745, %v1332, 0.0
    %v2050 = vadd.f32 %v2048, %v2049
    %v2051 = vsel %vm745, %v1333, 0.0
    %v2052 = vadd.f32 %v2050, %v2051
    %v2053 = vsel %vm745, %v1334, 0.0
    %v2054 = vadd.f32 %v2052, %v2053
    %v2055 = vsel %vm745, %v1335, 0.0
    %v2056 = vadd.f32 %v2054, %v2055
    %v2057 = vsel %vm745, %v1336, 0.0
    %v2058 = vadd.f32 %v2056, %v2057
    %v2059 = vsel %vm745, %v1337, 0.0
    %v2060 = vadd.f32 %v2058, %v2059
    %v2061 = vsel %vm745, %v1338, 0.0
    %v2062 = vadd.f32 %v2060, %v2061
    %v2063 = vrot.slane %v2062, 4
    %v2064 = vadd.f32 %v2062, %v2063
    %v2065 = vrot.slane %v2064, 2
    %v2066 = vadd.f32 %v2064, %v2065
    %v2067 = vrot.slane %v2066, 1
    %v2068 = vadd.f32 %v2066, %v2067
    %v2069 = vsel %vm745, %v1355, 0.0
    %v2070 = vsel %vm745, %v1356, 0.0
    %v2071 = vadd.f32 %v2069, %v2070
    %v2072 = vsel %vm745, %v1357, 0.0
    %v2073 = vadd.f32 %v2071, %v2072
    %v2074 = vsel %vm745, %v1358, 0.0
    %v2075 = vadd.f32 %v2073, %v2074
    %v2076 = vsel %vm745, %v1359, 0.0
    %v2077 = vadd.f32 %v2075, %v2076
    %v2078 = vsel %vm745, %v1360, 0.0
    %v2079 = vadd.f32 %v2077, %v2078
    %v2080 = vsel %vm745, %v1361, 0.0
    %v2081 = vadd.f32 %v2079, %v2080
    %v2082 = vsel %vm745, %v1362, 0.0
    %v2083 = vadd.f32 %v2081, %v2082
    %v2084 = vsel %vm745, %v1363, 0.0
    %v2085 = vadd.f32 %v2083, %v2084
    %v2086 = vsel %vm745, %v1364, 0.0
    %v2087 = vadd.f32 %v2085, %v2086
    %v2088 = vsel %vm745, %v1365, 0.0
    %v2089 = vadd.f32 %v2087, %v2088
    %v2090 = vsel %vm745, %v1366, 0.0
    %v2091 = vadd.f32 %v2089, %v2090
    %v2092 = vsel %vm745, %v1367, 0.0
    %v2093 = vadd.f32 %v2091, %v2092
    %v2094 = vsel %vm745, %v1368, 0.0
    %v2095 = vadd.f32 %v2093, %v2094
    %v2096 = vsel %vm745, %v1369, 0.0
    %v2097 = vadd.f32 %v2095, %v2096
    %v2098 = vsel %vm745, %v1370, 0.0
    %v2099 = vadd.f32 %v2097, %v2098
    %v2100 = vrot.slane %v2099, 4
    %v2101 = vadd.f32 %v2099, %v2100
    %v2102 = vrot.slane %v2101, 2
    %v2103 = vadd.f32 %v2101, %v2102
    %v2104 = vrot.slane %v2103, 1
    %v2105 = vadd.f32 %v2103, %v2104
    %v2106 = vsel %vm745, %v1339, 0.0
    %v2107 = vsel %vm745, %v1340, 0.0
    %v2108 = vadd.f32 %v2106, %v2107
    %v2109 = vsel %vm745, %v1341, 0.0
    %v2110 = vadd.f32 %v2108, %v2109
    %v2111 = vsel %vm745, %v1342, 0.0
    %v2112 = vadd.f32 %v2110, %v2111
    %v2113 = vsel %vm745, %v1343, 0.0
    %v2114 = vadd.f32 %v2112, %v2113
    %v2115 = vsel %vm745, %v1344, 0.0
    %v2116 = vadd.f32 %v2114, %v2115
    %v2117 = vsel %vm745, %v1345, 0.0
    %v2118 = vadd.f32 %v2116, %v2117
    %v2119 = vsel %vm745, %v1346, 0.0
    %v2120 = vadd.f32 %v2118, %v2119
    %v2121 = vsel %vm745, %v1347, 0.0
    %v2122 = vadd.f32 %v2120, %v2121
    %v2123 = vsel %vm745, %v1348, 0.0
    %v2124 = vadd.f32 %v2122, %v2123
    %v2125 = vsel %vm745, %v1349, 0.0
    %v2126 = vadd.f32 %v2124, %v2125
    %v2127 = vsel %vm745, %v1350, 0.0
    %v2128 = vadd.f32 %v2126, %v2127
    %v2129 = vsel %vm745, %v1351, 0.0
    %v2130 = vadd.f32 %v2128, %v2129
    %v2131 = vsel %vm745, %v1352, 0.0
    %v2132 = vadd.f32 %v2130, %v2131
    %v2133 = vsel %vm745, %v1353, 0.0
    %v2134 = vadd.f32 %v2132, %v2133
    %v2135 = vsel %vm745, %v1354, 0.0
    %v2136 = vadd.f32 %v2134, %v2135
    %v2137 = vrot.slane %v2136, 4
    %v2138 = vadd.f32 %v2136, %v2137
    %v2139 = vrot.slane %v2138, 2
    %v2140 = vadd.f32 %v2138, %v2139
    %v2141 = vrot.slane %v2140, 1
    %v2142 = vadd.f32 %v2140, %v2141
    %v2143 = vsel %vm745, %v1371, 0.0
    %v2144 = vsel %vm745, %v1372, 0.0
    %v2145 = vadd.f32 %v2143, %v2144
    %v2146 = vsel %vm745, %v1373, 0.0
    %v2147 = vadd.f32 %v2145, %v2146
    %v2148 = vsel %vm745, %v1374, 0.0
    %v2149 = vadd.f32 %v2147, %v2148
    %v2150 = vsel %vm745, %v1375, 0.0
    %v2151 = vadd.f32 %v2149, %v2150
    %v2152 = vsel %vm745, %v1376, 0.0
    %v2153 = vadd.f32 %v2151, %v2152
    %v2154 = vsel %vm745, %v1377, 0.0
    %v2155 = vadd.f32 %v2153, %v2154
    %v2156 = vsel %vm745, %v1378, 0.0
    %v2157 = vadd.f32 %v2155, %v2156
    %v2158 = vsel %vm745, %v1379, 0.0
    %v2159 = vadd.f32 %v2157, %v2158
    %v2160 = vsel %vm745, %v1380, 0.0
    %v2161 = vadd.f32 %v2159, %v2160
    %v2162 = vsel %vm745, %v1381, 0.0
    %v2163 = vadd.f32 %v2161, %v2162
    %v2164 = vsel %vm745, %v1382, 0.0
    %v2165 = vadd.f32 %v2163, %v2164
    %v2166 = vsel %vm745, %v1383, 0.0
    %v2167 = vadd.f32 %v2165, %v2166
    %v2168 = vsel %vm745, %v1384, 0.0
    %v2169 = vadd.f32 %v2167, %v2168
    %v2170 = vsel %vm745, %v1385, 0.0
    %v2171 = vadd.f32 %v2169, %v2170
    %v2172 = vsel %vm745, %v1386, 0.0
    %v2173 = vadd.f32 %v2171, %v2172
    %v2174 = vrot.slane %v2173, 4
    %v2175 = vadd.f32 %v2173, %v2174
    %v2176 = vrot.slane %v2175, 2
    %v2177 = vadd.f32 %v2175, %v2176
    %v2178 = vrot.slane %v2177, 1
    %v2179 = vadd.f32 %v2177, %v2178
    %v2180 = vmul.f32 %v2068, 0.0078125
    %v2181 = vmul.f32 %v2105, 0.0078125
    %v2182 = vmul.f32 %v2142, 0.0078125
    %v2183 = vmul.f32 %v2179, 0.0078125
    %v2184 = vadd.f32 %v2068, %v2142
    %v2185 = vadd.f32 %v2105, %v2179
    %v2186 = vmul.f32 %v2184, 0.00390625
    %v2187 = vmul.f32 %v2185, 0.00390625
    %v2188 = vsel %vm745, %v1968, 0.0
    %v2189 = vsel %vm745, %v1969, 0.0
    %v2190 = vadd.f32 %v2188, %v2189
    %v2191 = vsel %vm745, %v1970, 0.0
    %v2192 = vadd.f32 %v2190, %v2191
    %v2193 = vsel %vm745, %v1971, 0.0
    %v2194 = vadd.f32 %v2192, %v2193
    %v2195 = vsel %vm745, %v1972, 0.0
    %v2196 = vadd.f32 %v2194, %v2195
    %v2197 = vsel %vm745, %v1973, 0.0
    %v2198 = vadd.f32 %v2196, %v2197
    %v2199 = vsel %vm745, %v1974, 0.0
    %v2200 = vadd.f32 %v2198, %v2199
    %v2201 = vsel %vm745, %v1975, 0.0
    %v2202 = vadd.f32 %v2200, %v2201
    %v2203 = vsel %vm745, %v1976, 0.0
    %v2204 = vadd.f32 %v2202, %v2203
    %v2205 = vsel %vm745, %v1977, 0.0
    %v2206 = vadd.f32 %v2204, %v2205
    %v2207 = vsel %vm745, %v1978, 0.0
    %v2208 = vadd.f32 %v2206, %v2207
    %v2209 = vsel %vm745, %v1979, 0.0
    %v2210 = vadd.f32 %v2208, %v2209
    %v2211 = vsel %vm745, %v1980, 0.0
    %v2212 = vadd.f32 %v2210, %v2211
    %v2213 = vsel %vm745, %v1981, 0.0
    %v2214 = vadd.f32 %v2212, %v2213
    %v2215 = vsel %vm745, %v1982, 0.0
    %v2216 = vadd.f32 %v2214, %v2215
    %v2217 = vsel %vm745, %v1983, 0.0
    %v2218 = vadd.f32 %v2216, %v2217
    %v2219 = vsel %vm745, %v1984, 0.0
    %v2220 = vadd.f32 %v2218, %v2219
    %v2221 = vsel %vm745, %v1985, 0.0
    %v2222 = vadd.f32 %v2220, %v2221
    %v2223 = vsel %vm745, %v1986, 0.0
    %v2224 = vadd.f32 %v2222, %v2223
    %v2225 = vsel %vm745, %v1987, 0.0
    %v2226 = vadd.f32 %v2224, %v2225
    %v2227 = vsel %vm745, %v1988, 0.0
    %v2228 = vadd.f32 %v2226, %v2227
    %v2229 = vsel %vm745, %v1989, 0.0
    %v2230 = vadd.f32 %v2228, %v2229
    %v2231 = vsel %vm745, %v1990, 0.0
    %v2232 = vadd.f32 %v2230, %v2231
    %v2233 = vsel %vm745, %v1991, 0.0
    %v2234 = vadd.f32 %v2232, %v2233
    %v2235 = vsel %vm745, %v1992, 0.0
    %v2236 = vadd.f32 %v2234, %v2235
    %v2237 = vsel %vm745, %v1993, 0.0
    %v2238 = vadd.f32 %v2236, %v2237
    %v2239 = vsel %vm745, %v1994, 0.0
    %v2240 = vadd.f32 %v2238, %v2239
    %v2241 = vsel %vm745, %v1995, 0.0
    %v2242 = vadd.f32 %v2240, %v2241
    %v2243 = vsel %vm745, %v1996, 0.0
    %v2244 = vadd.f32 %v2242, %v2243
    %v2245 = vsel %vm745, %v1997, 0.0
    %v2246 = vadd.f32 %v2244, %v2245
    %v2247 = vsel %vm745, %v1998, 0.0
    %v2248 = vadd.f32 %v2246, %v2247
    %v2249 = vsel %vm745, %v1999, 0.0
    %v2250 = vadd.f32 %v2248, %v2249
    %v2251 = vrot.slane %v2250, 4
    %v2252 = vadd.f32 %v2250, %v2251
    %v2253 = vrot.slane %v2252, 2
    %v2254 = vadd.f32 %v2252, %v2253
    %v2255 = vrot.slane %v2254, 1
    %v2256 = vadd.f32 %v2254, %v2255
    %v2257 = vsel %vm745, %v2000, 0.0
    %v2258 = vsel %vm745, %v2001, 0.0
    %v2259 = vadd.f32 %v2257, %v2258
    %v2260 = vsel %vm745, %v2002, 0.0
    %v2261 = vadd.f32 %v2259, %v2260
    %v2262 = vsel %vm745, %v2003, 0.0
    %v2263 = vadd.f32 %v2261, %v2262
    %v2264 = vsel %vm745, %v2004, 0.0
    %v2265 = vadd.f32 %v2263, %v2264
    %v2266 = vsel %vm745, %v2005, 0.0
    %v2267 = vadd.f32 %v2265, %v2266
    %v2268 = vsel %vm745, %v2006, 0.0
    %v2269 = vadd.f32 %v2267, %v2268
    %v2270 = vsel %vm745, %v2007, 0.0
    %v2271 = vadd.f32 %v2269, %v2270
    %v2272 = vsel %vm745, %v2008, 0.0
    %v2273 = vadd.f32 %v2271, %v2272
    %v2274 = vsel %vm745, %v2009, 0.0
    %v2275 = vadd.f32 %v2273, %v2274
    %v2276 = vsel %vm745, %v2010, 0.0
    %v2277 = vadd.f32 %v2275, %v2276
    %v2278 = vsel %vm745, %v2011, 0.0
    %v2279 = vadd.f32 %v2277, %v2278
    %v2280 = vsel %vm745, %v2012, 0.0
    %v2281 = vadd.f32 %v2279, %v2280
    %v2282 = vsel %vm745, %v2013, 0.0
    %v2283 = vadd.f32 %v2281, %v2282
    %v2284 = vsel %vm745, %v2014, 0.0
    %v2285 = vadd.f32 %v2283, %v2284
    %v2286 = vsel %vm745, %v2015, 0.0
    %v2287 = vadd.f32 %v2285, %v2286
    %v2288 = vsel %vm745, %v2016, 0.0
    %v2289 = vadd.f32 %v2287, %v2288
    %v2290 = vsel %vm745, %v2017, 0.0
    %v2291 = vadd.f32 %v2289, %v2290
    %v2292 = vsel %vm745, %v2018, 0.0
    %v2293 = vadd.f32 %v2291, %v2292
    %v2294 = vsel %vm745, %v2019, 0.0
    %v2295 = vadd.f32 %v2293, %v2294
    %v2296 = vsel %vm745, %v2020, 0.0
    %v2297 = vadd.f32 %v2295, %v2296
    %v2298 = vsel %vm745, %v2021, 0.0
    %v2299 = vadd.f32 %v2297, %v2298
    %v2300 = vsel %vm745, %v2022, 0.0
    %v2301 = vadd.f32 %v2299, %v2300
    %v2302 = vsel %vm745, %v2023, 0.0
    %v2303 = vadd.f32 %v2301, %v2302
    %v2304 = vsel %vm745, %v2024, 0.0
    %v2305 = vadd.f32 %v2303, %v2304
    %v2306 = vsel %vm745, %v2025, 0.0
    %v2307 = vadd.f32 %v2305, %v2306
    %v2308 = vsel %vm745, %v2026, 0.0
    %v2309 = vadd.f32 %v2307, %v2308
    %v2310 = vsel %vm745, %v2027, 0.0
    %v2311 = vadd.f32 %v2309, %v2310
    %v2312 = vsel %vm745, %v2028, 0.0
    %v2313 = vadd.f32 %v2311, %v2312
    %v2314 = vsel %vm745, %v2029, 0.0
    %v2315 = vadd.f32 %v2313, %v2314
    %v2316 = vsel %vm745, %v2030, 0.0
    %v2317 = vadd.f32 %v2315, %v2316
    %v2318 = vsel %vm745, %v2031, 0.0
    %v2319 = vadd.f32 %v2317, %v2318
    %v2320 = vrot.slane %v2319, 4
    %v2321 = vadd.f32 %v2319, %v2320
    %v2322 = vrot.slane %v2321, 2
    %v2323 = vadd.f32 %v2321, %v2322
    %v2324 = vrot.slane %v2323, 1
    %v2325 = vadd.f32 %v2323, %v2324
    %v2326 = vmul.f32 %v2256, 0.00390625
    %v2327 = vmul.f32 %v2325, 0.00390625
    %v2328 = vld [vmem:[%s6] sm:$0x1]
    %v2329 = vld [vmem:[%s7] sm:$0x1]
    %vm2332 = vcmask 1041409
    %v2333 = vsel %vm2332, %v2327, %v2326
    %vm2337 = vcmask 1043459
    %v2338 = vsel %vm2337, %v2181, %v2180
    %vm2342 = vcmask 1045509
    %v2343 = vsel %vm2342, %v2183, %v2182
    %vm2347 = vcmask 1047559
    %v2348 = vsel %vm2347, %v2187, %v2186
    %vm2350 = vcmask 1041408
    %v2351 = vsel %vm2350, %v2333, %v2338
    %v2352 = vsel %vm288, %v2351, %v2343
    %vm2353 = vcmask 1045504
    %v2354 = vsel %vm2353, %v2352, %v2348
    %v2355 = vld [vmem:[%s4] sm:$0xff]
    %v2356 = vld [vmem:[%s4 + $0x8] sm:$0xff]
    %v2357 = vld [vmem:[%s4 + $0x10] sm:$0xff]
    %v2358 = vld [vmem:[%s4 + $0x18] sm:$0xff]
    %v2360 = vsel %vm745, %v2354, 0
    %2362 = vmatprep.subr.mxu0 0.0
    %2363 = vmatpush1.msra.mxu0 0.0
    %2364 = vmatprep.subr.mxu0 0.0
    %2365 = vmatpush1.msra.mxu0 0.0
    %2366 = vmatprep.subr.mxu0 0.0
    %2367 = vmatpush1.msra.mxu0 0.0
    %2368 = vmatprep.subr.mxu0 0.0
    %2369 = vmatpush1.msra.mxu0 0.0
    %2370 = vmatprep.subr.mxu0 0.0
    %2371 = vmatpush1.msra.mxu0 0.0
    %2372 = vmatprep.subr.mxu0 0.0
    %2373 = vmatpush1.msra.mxu0 0.0
    %2374 = vmatprep.subr.mxu0 0.0
    %2375 = vmatpush1.msra.mxu0 0.0
    %2376 = vmatprep.subr.mxu0 0.0
    %2377 = vmatpush1.msra.mxu0 0.0
    %2378 = vmatprep.subr.mxu0 0.0
    %2379 = vmatpush1.msra.mxu0 0.0
    %2380 = vmatprep.subr.mxu0 0.0
    %2381 = vmatpush1.msra.mxu0 0.0
    %2382 = vmatprep.subr.mxu0 0.0
    %2383 = vmatpush1.msra.mxu0 0.0
    %2384 = vmatprep.subr.mxu0 0.0
    %2385 = vmatpush1.msra.mxu0 0.0
    %2386 = vmatprep.subr.mxu0 0.0
    %2387 = vmatpush1.msra.mxu0 %v2358
    %2388 = vmatprep.subr.mxu0 0.0
    %2389 = vmatpush1.msra.mxu0 %v2357
    %2390 = vmatprep.subr.mxu0 0.0
    %2391 = vmatpush1.msra.mxu0 %v2356
    %2392 = vmatprep.subr.mxu0 0.0
    %2393 = vmatpush1.msra.mxu0 %v2355
    %2394 = vmatprep.subr.mxu0 0.0
    %2395 = vmatpush2.msra.mxu0 0.0
    %2396 = vmatprep.subr.mxu0 0.0
    %2397 = vmatpush2.msra.mxu0 0.0
    %2398 = vmatprep.subr.mxu0 0.0
    %2399 = vmatpush2.msra.mxu0 0.0
    %2400 = vmatprep.subr.mxu0 0.0
    %2401 = vmatpush2.msra.mxu0 0.0
    %2402 = vmatprep.subr.mxu0 0.0
    %2403 = vmatpush2.msra.mxu0 0.0
    %2404 = vmatprep.subr.mxu0 0.0
    %2405 = vmatpush2.msra.mxu0 0.0
    %2406 = vmatprep.subr.mxu0 0.0
    %2407 = vmatpush2.msra.mxu0 0.0
    %2408 = vmatprep.subr.mxu0 0.0
    %2409 = vmatpush2.msra.mxu0 0.0
    %2410 = vmatprep.subr.mxu0 0.0
    %2411 = vmatpush2.msra.mxu0 0.0
    %2412 = vmatprep.subr.mxu0 0.0
    %2413 = vmatpush2.msra.mxu0 0.0
    %2414 = vmatprep.subr.mxu0 0.0
    %2415 = vmatpush2.msra.mxu0 0.0
    %2416 = vmatprep.subr.mxu0 0.0
    %2417 = vmatpush2.msra.mxu0 0.0
    %2418 = vmatprep.subr.mxu0 0.0
    %2419 = vmatpush2.msra.mxu0 0.0
    %2420 = vmatprep.subr.mxu0 0.0
    %2421 = vmatpush2.msra.mxu0 0.0
    %2422 = vmatprep.subr.mxu0 0.0
    %2423 = vmatpush2.msra.mxu0 0.0
    %2424 = vmatprep.subr.mxu0 0.0
    %2425 = vmatpush2.msra.mxu0 0.0
    %2426 = vmatprep.mubr.f32.mxu0 0.0
    %2427 = vmatmul.mubr.f32.gmra.mxu0 %v2360
    %v2428 = vpop.f32.mrf.mxu0
    %v2429 = vadd.f32 0.0, %v2428
    %v2430 = vpop.f32.mrf.mxu0
    %2431 = vdwg.mxu0
    %v2433 = vlaneseq
    %v2434 = vshrl.u32 %v2433, 7
    %v2435 = vsub.s32 0, %v2434
    %v2436 = vrot.slane %v2328, %v2435
    %v2438 = vmul.f32 %v2429, %v2436
    %v2440 = vlaneseq
    %v2441 = vshrl.u32 %v2440, 7
    %v2442 = vsub.s32 0, %v2441
    %v2443 = vrot.slane %v2329, %v2442
    %v2445 = vadd.f32 %v2438, %v2443
    %v2446 = vsel %vm2332, %v2187, %v2186
    %v2448 = vsel %vm2337, %v2187, %v2186
    %2449 = vrot.lane.b32.xlu0 %v2448, 112
    %v2450 = vpop.permute.xlu0 %2449
    %v2452 = vsel %vm2350, %v2446, %v2450
    %v2453 = vld [vmem:[%s5] sm:$0xff]
    %v2454 = vld [vmem:[%s5 + $0x8] sm:$0xff]
    %vm2455 = vcmask 130048
    %v2457 = vsel %vm2455, %v2452, 0
    %2459 = vmatprep.subr.mxu0 0.0
    %2460 = vmatpush1.msra.mxu0 0.0
    %2461 = vmatprep.subr.mxu0 0.0
    %2462 = vmatpush1.msra.mxu0 0.0
    %2463 = vmatprep.subr.mxu0 0.0
    %2464 = vmatpush1.msra.mxu0 0.0
    %2465 = vmatprep.subr.mxu0 0.0
    %2466 = vmatpush1.msra.mxu0 0.0
    %2467 = vmatprep.subr.mxu0 0.0
    %2468 = vmatpush1.msra.mxu0 0.0
    %2469 = vmatprep.subr.mxu0 0.0
    %2470 = vmatpush1.msra.mxu0 0.0
    %2471 = vmatprep.subr.mxu0 0.0
    %2472 = vmatpush1.msra.mxu0 0.0
    %2473 = vmatprep.subr.mxu0 0.0
    %2474 = vmatpush1.msra.mxu0 0.0
    %2475 = vmatprep.subr.mxu0 0.0
    %2476 = vmatpush1.msra.mxu0 0.0
    %2477 = vmatprep.subr.mxu0 0.0
    %2478 = vmatpush1.msra.mxu0 0.0
    %2479 = vmatprep.subr.mxu0 0.0
    %2480 = vmatpush1.msra.mxu0 0.0
    %2481 = vmatprep.subr.mxu0 0.0
    %2482 = vmatpush1.msra.mxu0 0.0
    %2483 = vmatprep.subr.mxu0 0.0
    %2484 = vmatpush1.msra.mxu0 0.0
    %2485 = vmatprep.subr.mxu0 0.0
    %2486 = vmatpush1.msra.mxu0 0.0
    %2487 = vmatprep.subr.mxu0 0.0
    %2488 = vmatpush1.msra.mxu0 %v2454
    %2489 = vmatprep.subr.mxu0 0.0
    %2490 = vmatpush1.msra.mxu0 %v2453
    %2491 = vmatprep.subr.mxu0 0.0
    %2492 = vmatpush2.msra.mxu0 0.0
    %2493 = vmatprep.subr.mxu0 0.0
    %2494 = vmatpush2.msra.mxu0 0.0
    %2495 = vmatprep.subr.mxu0 0.0
    %2496 = vmatpush2.msra.mxu0 0.0
    %2497 = vmatprep.subr.mxu0 0.0
    %2498 = vmatpush2.msra.mxu0 0.0
    %2499 = vmatprep.subr.mxu0 0.0
    %2500 = vmatpush2.msra.mxu0 0.0
    %2501 = vmatprep.subr.mxu0 0.0
    %2502 = vmatpush2.msra.mxu0 0.0
    %2503 = vmatprep.subr.mxu0 0.0
    %2504 = vmatpush2.msra.mxu0 0.0
    %2505 = vmatprep.subr.mxu0 0.0
    %2506 = vmatpush2.msra.mxu0 0.0
    %2507 = vmatprep.subr.mxu0 0.0
    %2508 = vmatpush2.msra.mxu0 0.0
    %2509 = vmatprep.subr.mxu0 0.0
    %2510 = vmatpush2.msra.mxu0 0.0
    %2511 = vmatprep.subr.mxu0 0.0
    %2512 = vmatpush2.msra.mxu0 0.0
    %2513 = vmatprep.subr.mxu0 0.0
    %2514 = vmatpush2.msra.mxu0 0.0
    %2515 = vmatprep.subr.mxu0 0.0
    %2516 = vmatpush2.msra.mxu0 0.0
    %2517 = vmatprep.subr.mxu0 0.0
    %2518 = vmatpush2.msra.mxu0 0.0
    %2519 = vmatprep.subr.mxu0 0.0
    %2520 = vmatpush2.msra.mxu0 0.0
    %2521 = vmatprep.subr.mxu0 0.0
    %2522 = vmatpush2.msra.mxu0 0.0
    %2523 = vmatprep.mubr.f32.mxu0 0.0
    %2524 = vmatmul.mubr.f32.gmra.mxu0 %v2457
    %v2525 = vpop.f32.mrf.mxu0
    %v2526 = vadd.f32 0.0, %v2525
    %v2527 = vpop.f32.mrf.mxu0
    %2528 = vdwg.mxu0
    %v2529 = vmax.f32 %v2526, 0.0
    %v2530 = vmul.f32 %v2529, %v2436
    %v2531 = vadd.f32 %v2530, %v2443
    %2533 = vrot.lane.b32.xlu0 %v2445, 32
    %v2534 = vpop.permute.xlu0 %2533
    %2537 = vrot.lane.b32.xlu0 %v2531, 64
    %v2538 = vpop.permute.xlu0 %2537
    %v2540 = vrot.slane %v2531, 2
    %2541 = vrot.lane.b32.xlu0 %v2540, 96
    %v2542 = vpop.permute.xlu0 %2541
    %v2544 = vrot.slane %v2445, 2
    %v2546 = vrot.slane %v2445, 4
    %2547 = vrot.lane.b32.xlu0 %v2546, 32
    %v2548 = vpop.permute.xlu0 %2547
    %v2550 = vrot.slane %v2445, 6
    %2551 = vrot.lane.b32.xlu0 %v2550, 64
    %v2552 = vpop.permute.xlu0 %2551
    %v2554 = vsel %vm745, %v2445, %v2534
    %vm2555 = vcmask 523264
    %v2556 = vsel %vm2555, %v2554, %v2538
    %vm2557 = vcmask 785408
    %v2558 = vsel %vm2557, %v2556, %v2542
    %v2559 = vsel %vm745, %v2544, %v2548
    %v2560 = vsel %vm2555, %v2559, %v2552
    %v2563 = vcombine.low %v2558, %v2560
    %v2565 = vunpack.c.l.s4 1983009808
    %v2566 = vunpack.c.0.s8 %v2565
    %v2567 = vlaneseq
    %v2568 = vshrl.u32 %v2567, 7
    %v2569 = vsub.s32 %v2566, %v2568
    %v2570 = vrot.slane %v2563, %v2569
    %vm2572 = vcmask 781314
    %vm2573 = vmor %vm2572, %vm2350
    %2574 = vst.msk [vmem:[#allocation2] sm:$0xf] %vm2573, %v2570
    // Predicated region
    $region34: #{tpu_custom_call.1} parent=1 // pred_check
      _
    $region35: #{tpu_custom_call.1} parent=1 // pred_check_branch
      %2576 = sbr.rel (0) target = $region37
    $region36: #{tpu_custom_call.1} parent=1 // pred_region
      %s2578 = ssub.s32 64, 64
      %2579 = vsyncadd [#allocation3], %s2578
      %s2581 = sshll.u32 [#allocation2], 4
      %s2582 = int_to_ptr.vmem [resolvable:$true] %s2581
      %2584 = dma.vmem_to_hbm [thread:$0]  %s2582, 64, %s8, [#allocation3]
    $region37: #{tpu_custom_call.1} parent=1 // pred_fallthru
      _
    // Predicated region
    $region38: #{tpu_custom_call.1} parent=1 // pred_check
      _
    $region39: #{tpu_custom_call.1} parent=1 // pred_check_branch
      %2586 = sbr.rel (0) target = $region41
    $region40: #{tpu_custom_call.1} parent=1 // pred_region
      %2587 = dma.done [#allocation3], 64
    $region41: #{tpu_custom_call.1} parent=1 // pred_fallthru
      _
    %2588 = vsyncpa [#allocation3], 1

</llo_original>
